<compile_context>
chip_gen: v6e
topology: v6e:2x2x1
jax: 0.10.0
libtpu: 0.0.40
codegen_flags: <defaults>
</compile_context>

<pallas_src>
import functools

import numpy as np
import jax
import jax.numpy as jnp
from jax.experimental import pallas as pl
from jax.experimental.pallas import tpu as pltpu


def _round_up(x, m):
    return (x + m - 1) // m * m


# ----------------------------------------------------------------------------
# Tiled MXU GEMM with optional fused epilogue activation
# ----------------------------------------------------------------------------
def _matmul_kernel(a_ref, b_ref, o_ref, acc_ref, *, act, neg_slope):
    @pl.when(pl.program_id(2) == 0)
    def _():
        acc_ref[...] = jnp.zeros_like(acc_ref)

    acc_ref[...] += jnp.dot(a_ref[...], b_ref[...],
                            preferred_element_type=jnp.float32)

    @pl.when(pl.program_id(2) == pl.num_programs(2) - 1)
    def _():
        r = acc_ref[...]
        if act == "leaky":
            r = jnp.where(r > 0, r, neg_slope * r)
        elif act == "sigmoid":
            r = jax.nn.sigmoid(r)
        o_ref[...] = r.astype(o_ref.dtype)


def matmul_pallas(a, b, *, act="none", neg_slope=0.2, out_dtype=jnp.float32):
    """C = act(A @ B).  A:(M,K)  B:(K,N).  bf16 operands, fp32 accumulation."""
    M, K = a.shape
    K2, N = b.shape
    assert K == K2
    a = a.astype(jnp.bfloat16)
    b = b.astype(jnp.bfloat16)

    Np0 = _round_up(N, 128)
    Kp0 = _round_up(K, 128)
    # Tile selection: big lane-dense output tiles; all buffers stay well
    # under the default scoped VMEM limits on v5e/v6e/v7x.
    tm = 512 if (M >= 512 and Np0 <= 256) else min(256, _round_up(M, 8))
    tn = min(512, Np0)
    ks = -(-Kp0 // 2048)                       # number of K steps (tk <= 2048)
    tk = _round_up(-(-Kp0 // ks), 128)
    Mp = _round_up(M, tm)
    Kp = ks * tk
    Np = _round_up(Np0, tn)

    if (Mp, Kp) != (M, K):
        a = jnp.pad(a, ((0, Mp - M), (0, Kp - K)))
    if (Kp, Np) != (K, N):
        b = jnp.pad(b, ((0, Kp - K), (0, Np - N)))

    out = pl.pallas_call(
        functools.partial(_matmul_kernel, act=act, neg_slope=neg_slope),
        out_shape=jax.ShapeDtypeStruct((Mp, Np), out_dtype),
        grid_spec=pltpu.PrefetchScalarGridSpec(
            num_scalar_prefetch=0,
            grid=(Mp // tm, Np // tn, Kp // tk),
            in_specs=[pl.BlockSpec((tm, tk), lambda i, j, k: (i, k)),
                      pl.BlockSpec((tk, tn), lambda i, j, k: (k, j))],
            out_specs=pl.BlockSpec((tm, tn), lambda i, j, k: (i, j)),
            scratch_shapes=[pltpu.VMEM((tm, tn), jnp.float32)]),
        compiler_params=pltpu.CompilerParams(
            dimension_semantics=("parallel", "parallel", "arbitrary")),
    )(a, b)
    if (Mp, Np) != (M, N):
        out = out[:M, :N]
    return out


# ----------------------------------------------------------------------------
# InstanceNorm2d (affine=False) + LeakyReLU / ReLU  (gridded VPU kernel)
# ----------------------------------------------------------------------------
def _norm_act_kernel(x_ref, o_ref, *, neg_slope, eps):
    x = x_ref[...].astype(jnp.float32)                  # (1, HW, Cb)
    mean = jnp.mean(x, axis=1, keepdims=True)
    var = jnp.mean(x * x, axis=1, keepdims=True) - mean * mean
    y = (x - mean) * jax.lax.rsqrt(jnp.maximum(var, 0.0) + eps)
    o_ref[...] = jnp.where(y > 0, y, neg_slope * y).astype(o_ref.dtype)


def instance_norm_act(x, neg_slope, eps=1e-5):
    """x: (N,H,W,C) -> InstanceNorm2d(affine=False, eps=1e-5) + LeakyReLU."""
    N, H, W, C = x.shape
    HW = H * W
    Cb = C if C <= 512 else 512                          # channel blocks
    out = pl.pallas_call(
        functools.partial(_norm_act_kernel, neg_slope=neg_slope, eps=eps),
        out_shape=jax.ShapeDtypeStruct((N, HW, C), jnp.bfloat16),
        grid_spec=pltpu.PrefetchScalarGridSpec(
            num_scalar_prefetch=0,
            grid=(N, C // Cb),
            in_specs=[pl.BlockSpec((1, HW, Cb), lambda n, c: (n, 0, c))],
            out_specs=pl.BlockSpec((1, HW, Cb), lambda n, c: (n, 0, c))),
        compiler_params=pltpu.CompilerParams(
            dimension_semantics=("parallel", "parallel")),
    )(x.reshape(N, HW, C))
    return out.reshape(N, H, W, C)


# ----------------------------------------------------------------------------
# im2col (NHWC) + conv wrappers on the Pallas GEMM
# ----------------------------------------------------------------------------
def _im2col(x, k, stride, pad):
    """x:(N,H,W,C) -> A:(N*Ho*Wo, k*k*C), column order (kh, kw, c)."""
    N, H, W, C = x.shape
    if pad:
        x = jnp.pad(x, ((0, 0), (pad, pad), (pad, pad), (0, 0)))
    Ho = (H + 2 * pad - k) // stride + 1
    Wo = (W + 2 * pad - k) // stride + 1
    cols = [x[:, di:di + stride * Ho:stride, dj:dj + stride * Wo:stride, :]
            for di in range(k) for dj in range(k)]
    a = jnp.concatenate(cols, axis=-1)
    return a.reshape(N * Ho * Wo, k * k * C), (N, Ho, Wo)


def _depth_to_space2(y, N, H, W, C):
    """(N*H*W, 4*C) phase-major columns -> (N, 2H, 2W, C)."""
    y = y.reshape(N, H, W, 2, 2, C).transpose(0, 1, 3, 2, 4, 5)
    return y.reshape(N, 2 * H, 2 * W, C)


def conv_down(x, w_gemm, fused_act):
    """Conv2d(k=4, stride=2, pad=1, bias=False)."""
    a, (N, Ho, Wo) = _im2col(x, 4, 2, 1)
    if fused_act:        # no InstanceNorm follows -> fuse LeakyReLU(0.2)
        out = matmul_pallas(a, w_gemm, act="leaky", neg_slope=0.2,
                            out_dtype=jnp.bfloat16)
    else:
        out = matmul_pallas(a, w_gemm, out_dtype=jnp.float32)
    return out.reshape(N, Ho, Wo, w_gemm.shape[1])


def conv_up(x, w_gemm):
    """ConvTranspose2d(k=4, s=2, p=1, bias=False) as 3x3 sub-pixel conv."""
    a, (N, H, W) = _im2col(x, 3, 1, 1)
    out = matmul_pallas(a, w_gemm, out_dtype=jnp.float32)   # (N*H*W, 4*Cout)
    return _depth_to_space2(out, N, H, W, w_gemm.shape[1] // 4)


def conv_final(x, w_gemm, bias4):
    """Upsample(x2) + ZeroPad2d((1,0,1,0)) + Conv2d(k=4,p=1) + Sigmoid,
    folded into a 3x3 sub-pixel conv with fused bias+sigmoid epilogue."""
    a, (N, H, W) = _im2col(x, 3, 1, 1)
    a = jnp.concatenate([a, jnp.ones((a.shape[0], 1), a.dtype)], axis=1)
    w_aug = jnp.concatenate([w_gemm.astype(jnp.float32),
                             bias4[None, :].astype(jnp.float32)], axis=0)
    out = matmul_pallas(a, w_aug, act="sigmoid", out_dtype=jnp.float32)
    return _depth_to_space2(out, N, H, W, w_gemm.shape[1] // 4)


# ----------------------------------------------------------------------------
# Weight folding (PyTorch layouts -> GEMM-ready matrices)
# ----------------------------------------------------------------------------
# T[a, r, k]: maps 4-tap kernel index k onto 3x3-window row r for output
# parity a.  _T_DECONV is derived from ConvTranspose2d(k=4,s=2,p=1);
# _T_UPSAMPLE from Upsample(x2,nearest)+ZeroPad2d((1,0,1,0))+Conv2d(k=4,p=1).
_T_DECONV = np.zeros((2, 3, 4), np.float32)
_T_DECONV[0, 0, 3] = 1.0
_T_DECONV[0, 1, 1] = 1.0
_T_DECONV[1, 1, 2] = 1.0
_T_DECONV[1, 2, 0] = 1.0

_T_UPSAMPLE = np.zeros((2, 3, 4), np.float32)
_T_UPSAMPLE[0, 0, 0] = 1.0
_T_UPSAMPLE[0, 0, 1] = 1.0
_T_UPSAMPLE[0, 1, 2] = 1.0
_T_UPSAMPLE[0, 1, 3] = 1.0
_T_UPSAMPLE[1, 0, 0] = 1.0
_T_UPSAMPLE[1, 1, 1] = 1.0
_T_UPSAMPLE[1, 1, 2] = 1.0
_T_UPSAMPLE[1, 2, 3] = 1.0


def _prep_down_w(w):
    # Conv2d weight (Cout, Cin, 4, 4) -> (16*Cin, Cout)
    cout, cin = w.shape[0], w.shape[1]
    return w.transpose(2, 3, 1, 0).reshape(16 * cin, cout).astype(jnp.bfloat16)


def _prep_up_w(w_t):
    # ConvTranspose2d weight (Cin, Cout, 4, 4) -> (9*Cin, 4*Cout) phase-major
    cin, cout = w_t.shape[0], w_t.shape[1]
    b6 = jnp.einsum("ark,bcl,iokl->rciabo", _T_DECONV, _T_DECONV, w_t)
    return b6.reshape(9 * cin, 4 * cout).astype(jnp.bfloat16)


def _prep_final_w(w):
    # Conv2d weight (Cout, Cin, 4, 4) of the post-upsample conv
    # -> (9*Cin, 4*Cout) with the nearest-neighbour upsample folded in
    cout, cin = w.shape[0], w.shape[1]
    b6 = jnp.einsum("ark,bcl,oikl->rciabo", _T_UPSAMPLE, _T_UPSAMPLE, w)
    return b6.reshape(9 * cin, 4 * cout).astype(jnp.bfloat16)


# ----------------------------------------------------------------------------
# GeneratorUNet
# ----------------------------------------------------------------------------
DOWN_CFG = [(3, 64, False), (64, 128, True), (128, 256, True), (256, 512, True),
            (512, 512, True), (512, 512, True), (512, 512, True),
            (512, 512, False)]
UP_CFG = [(512, 512), (1024, 512), (1024, 512), (1024, 512),
          (1024, 256), (512, 128), (256, 64)]


def init_params(key, out_channels=3):
    params = {"down": [], "up": []}
    keys = jax.random.split(key, len(DOWN_CFG) + len(UP_CFG) + 2)
    ki = 0
    for (cin, cout, _) in DOWN_CFG:
        params["down"].append(
            jax.random.normal(keys[ki], (cout, cin, 4, 4), jnp.float32) * 0.05)
        ki += 1
    for (cin, cout) in UP_CFG:
        params["up"].append(
            jax.random.normal(keys[ki], (cin, cout, 4, 4), jnp.float32) * 0.05)
        ki += 1
    params["final_w"] = jax.random.normal(
        keys[ki], (out_channels, 128, 4, 4), jnp.float32) * 0.05
    ki += 1
    params["final_b"] = jax.random.normal(
        keys[ki], (out_channels,), jnp.float32) * 0.05
    return params


def prepare_params(params):
    """Fold PyTorch-layout weights into GEMM-ready bf16 matrices (done once)."""
    return {
        "down": [_prep_down_w(w) for w in params["down"]],
        "up": [_prep_up_w(w) for w in params["up"]],
        "final_w": _prep_final_w(params["final_w"]),
        "final_b": jnp.tile(params["final_b"], 4),        # phase-major bias
    }


def generator_unet(gp, x_nchw):
    """x_nchw: (N, 3, 256, 256) fp32 -> (N, 3, 256, 256) fp32 in [0, 1]."""
    x = jnp.transpose(x_nchw, (0, 2, 3, 1)).astype(jnp.bfloat16)   # NHWC bf16

    d = []
    h = x
    for w, (_, _, normalize) in zip(gp["down"], DOWN_CFG):
        h = conv_down(h, w, fused_act=not normalize)
        if normalize:
            h = instance_norm_act(h, neg_slope=0.2)   # InstanceNorm + LeakyReLU
        # TODO(synk): dropout on down4..down8 is identity (eval semantics)
        d.append(h)
    d1, d2, d3, d4, d5, d6, d7, d8 = d

    u = d8
    for w, skip in zip(gp["up"], [d7, d6, d5, d4, d3, d2, d1]):
        y = conv_up(u, w)
        y = instance_norm_act(y, neg_slope=0.0)       # InstanceNorm + ReLU
        u = jnp.concatenate([y, skip], axis=-1)       # skip connection

    out = conv_final(u, gp["final_w"], gp["final_b"])  # (N, 256, 256, 3) fp32
    return jnp.transpose(out, (0, 3, 1, 2))            # back to NCHW


if __name__ == "__main__":
    key = jax.random.PRNGKey(0)
    kx, kp = jax.random.split(key)
    # Smallest spatial size the 8-level UNet admits is 256 (8 stride-2
    # halvings down to 1x1); batch=1 keeps the example minimal.
    x = jax.random.normal(kx, (1, 3, 256, 256), jnp.float32)
    params = init_params(kp, out_channels=3)
    gp = prepare_params(params)

    y = generator_unet(gp, x)
    y = jax.block_until_ready(y)

    assert y.shape == (1, 3, 256, 256), y.shape
    assert bool(jnp.all(jnp.isfinite(y)))
    assert bool(jnp.all((y >= 0.0) & (y <= 1.0)))   # sigmoid output range
    print("KERNEL_OK")
</pallas_src>

<mosaic_0001>
module attributes {stable_mosaic.version = 11 : i64} {
  func.func @_matmul_kernel(%arg0: i32, %arg1: i32, %arg2: i32, %arg3: memref<512x128xbf16, #tpu.memory_space<vmem>>, %arg4: memref<128x128xbf16, #tpu.memory_space<vmem>>, %arg5: memref<512x128xbf16, #tpu.memory_space<vmem>>, %arg6: memref<512x128xf32, #tpu.memory_space<vmem>>) attributes {dimension_semantics = [#tpu.dimension_semantics<parallel>, #tpu.dimension_semantics<parallel>, #tpu.dimension_semantics<arbitrary>], iteration_bounds = array<i64: 32, 1, 1>, scalar_prefetch = 0 : i64, scratch_operands = 1 : i64, tpu.core_type = #tpu.core_type<tc>, window_params = [{transform_indices = @transform_0, window_bounds = array<i64: 512, 128>}, {transform_indices = @transform_1, window_bounds = array<i64: 128, 128>}, {transform_indices = @transform_2, window_bounds = array<i64: 512, 128>}]} {
    %c0_i32 = arith.constant 0 : i32
    %0 = arith.cmpi eq, %arg2, %c0_i32 : i32
    %1 = arith.extui %0 : i1 to i32
    %c0_i32_0 = arith.constant 0 : i32
    %2 = arith.cmpi ne, %1, %c0_i32_0 : i32
    scf.if %2 {
      %cst_10 = arith.constant 0.000000e+00 : f32
      %12 = vector.broadcast %cst_10 : f32 to vector<512x128xf32>
      %c0_11 = arith.constant 0 : index
      %c0_12 = arith.constant 0 : index
      %13 = vector.load %arg6[%c0_11, %c0_12] : memref<512x128xf32, #tpu.memory_space<vmem>>, vector<512x128xf32>
      tpu.vector_store %arg6[%c0_11, %c0_12], %12 {strides = array<i32>} : memref<512x128xf32, #tpu.memory_space<vmem>>, vector<512x128xf32>,
    } else {
    }
    %c0 = arith.constant 0 : index
    %c0_1 = arith.constant 0 : index
    %3 = vector.load %arg6[%c0, %c0_1] : memref<512x128xf32, #tpu.memory_space<vmem>>, vector<512x128xf32>
    %c0_2 = arith.constant 0 : index
    %c0_3 = arith.constant 0 : index
    %4 = vector.load %arg3[%c0_2, %c0_3] : memref<512x128xbf16, #tpu.memory_space<vmem>>, vector<512x128xbf16>
    %c0_4 = arith.constant 0 : index
    %c0_5 = arith.constant 0 : index
    %5 = vector.load %arg4[%c0_4, %c0_5] : memref<128x128xbf16, #tpu.memory_space<vmem>>, vector<128x128xbf16>
    %cst = arith.constant dense<0.000000e+00> : vector<512x128xf32>
    %6 = tpu.matmul %4, %5, %cst {dimension_numbers = #tpu.dot_dimension_numbers<[1], [0], [0], [1], [0, 0, 1, 1], [], []>} : vector<512x128xbf16>, vector<128x128xbf16>, vector<512x128xf32> -> vector<512x128xf32>
    %7 = arith.addf %3, %6 : vector<512x128xf32>
    %c0_6 = arith.constant 0 : index
    %c0_7 = arith.constant 0 : index
    %8 = vector.load %arg6[%c0_6, %c0_7] : memref<512x128xf32, #tpu.memory_space<vmem>>, vector<512x128xf32>
    tpu.vector_store %arg6[%c0_6, %c0_7], %7 {strides = array<i32>} : memref<512x128xf32, #tpu.memory_space<vmem>>, vector<512x128xf32>,
    %c0_i32_8 = arith.constant 0 : i32
    %9 = arith.cmpi eq, %arg2, %c0_i32_8 : i32
    %10 = arith.extui %9 : i1 to i32
    %c0_i32_9 = arith.constant 0 : i32
    %11 = arith.cmpi ne, %10, %c0_i32_9 : i32
    scf.if %11 {
      %c0_10 = arith.constant 0 : index
      %c0_11 = arith.constant 0 : index
      %12 = vector.load %arg6[%c0_10, %c0_11] : memref<512x128xf32, #tpu.memory_space<vmem>>, vector<512x128xf32>
      %cst_12 = arith.constant 0.000000e+00 : f32
      %13 = vector.broadcast %cst_12 : f32 to vector<512x128xf32>
      %14 = arith.cmpf ogt, %12, %13 : vector<512x128xf32>
      %cst_13 = arith.constant 2.000000e-01 : f32
      %15 = vector.broadcast %cst_13 : f32 to vector<512x128xf32>
      %16 = arith.mulf %15, %12 : vector<512x128xf32>
      %17 = arith.select %14, %12, %16 : vector<512x128xi1>, vector<512x128xf32>
      %18 = arith.truncf %17 : vector<512x128xf32> to vector<512x128xbf16>
      %c0_14 = arith.constant 0 : index
      %c0_15 = arith.constant 0 : index
      %19 = vector.load %arg5[%c0_14, %c0_15] : memref<512x128xbf16, #tpu.memory_space<vmem>>, vector<512x128xbf16>
      tpu.vector_store %arg5[%c0_14, %c0_15], %18 {strides = array<i32>} : memref<512x128xbf16, #tpu.memory_space<vmem>>, vector<512x128xbf16>,
    } else {
    }
    return
  }
  func.func @transform_0(%arg0: i32, %arg1: i32, %arg2: i32) -> (i32, i32) {
    %c0_i32 = arith.constant 0 : i32
    return %arg0, %arg2 : i32, i32
  }
  func.func @transform_1(%arg0: i32, %arg1: i32, %arg2: i32) -> (i32, i32) {
    %c0_i32 = arith.constant 0 : i32
    return %arg2, %arg1 : i32, i32
  }
  func.func @transform_2(%arg0: i32, %arg1: i32, %arg2: i32) -> (i32, i32) {
    %c0_i32 = arith.constant 0 : i32
    return %arg0, %arg1 : i32, i32
  }
}

</mosaic_0001>

<llo_original>
// kernel: tpu_custom_call.1
$region0: #{tpu_custom_call.1}
  #allocation0 [shape = 'u32[]', space=smem, size = 0x4, offset = 0x4, fixed_abs, tag = 'smem constant byte address 0x4 - core index']
  #allocation1 [shape = 'u32[144,128]{1,0:T(1,128)}', space=vmem, size = 0x12000, scoped, tag = 'internal scratch']
  #allocation2 [shape = 'f32[512,128]{1,0:T(8,128)}', space=vmem, size = 0x40000, scoped, tag = 'scratch operand']
  %s0 = inlined_call_operand.hbm [shape: bf16[16384,128], index: 0, kind: input, shape index: {}]
  %s1 = inlined_call_operand.hbm [shape: bf16[128,128], index: 1, kind: input, shape index: {}]
  %s2 = inlined_call_operand.hbm [shape: bf16[16384,128], index: 2, kind: output, shape index: {}]
  %s3 = sld [smem:[#allocation0]]
  $region57: #{tpu_custom_call.1} parent=0
    _
  %s5 = ssub.s32 1, %s3
  %s6 = scalar_select 0, %s5, %s3
  $region1: #{tpu_custom_call.1} parent=0
    #allocation3 [shape = 'u8[262144]{0}', space=vmem, size = 0x40000, scoped, tag = 'input window, operand 0']
    #allocation4 [shape = 's32[2]{0}', space=sflag, size = 0x8, scoped, tag = 'scoped memory for tpu_custom_call.1']
    #allocation5 [shape = 's32[2]{0}', space=sflag, size = 0x8, scoped, tag = 'scoped memory for tpu_custom_call.1']
    #allocation6 [shape = 'u8[32768]{0}', space=vmem, size = 0x8000, scoped, tag = 'input window, operand 1, single buffered']
    #allocation7 [shape = 's32[1]{0}', space=sflag, size = 0x4, scoped, tag = 'scoped memory for tpu_custom_call.1']
    #allocation8 [shape = 'u8[262144]{0}', space=vmem, size = 0x40000, scoped, tag = 'output window, operand 0']
    %7 = vsyncpa [#allocation4], 0
    %s8 = scalar_lea.sflag [#allocation4], 1
    %9 = vsyncpa %s8, 0
    %10 = vsyncpa [#allocation7], 0
    %11 = vsyncpa [#allocation5], 0
    %s12 = scalar_lea.sflag [#allocation5], 1
    %13 = vsyncpa %s12, 0
    loop: start=0, step=1, limit=34
    $region2: #{tpu_custom_call.1} parent=1 // loop_pre_header
      _
    $region3: #{tpu_custom_call.1} parent=1 // loop_header
      %s15 = sphi 0, %s19
      %p16 = scmp.ge.s32.totalorder %s15, 34
      %s22 = sphi 0, %s41
      %s23 = sphi 0, %s37
      %s24 = sphi 0, %s33
      %s25 = sphi 0, %s22
      %s26 = sphi 0, %s23
      %s27 = sphi 0, %s24
      %s28 = sphi 0, %s25
      %s29 = sphi 0, %s26
      %s30 = sphi 0, %s27
      %s46 = sphi 0, %s48
      %s49 = sphi 0, %s46
      %s50 = sphi 0, %s49
      %s66 = sphi 0, %s50
      %s74 = sphi 0, %s76
      %s77 = sphi 0, %s74
      %s78 = sphi 0, %s77
      %s94 = sphi 0, %s78
      %s102 = sphi 0, %s104
      %s105 = sphi 0, %s102
      %s106 = sphi 0, %s105
      %s122 = sphi 0, %s106
    $region4: #{tpu_custom_call.1} parent=1 // loop_header_branch
      %18 = sbr.rel (%p16) target = $region8
    $region5: #{tpu_custom_call.1} parent=1 // loop_body
      %s20 = ssub.s32 %s15, 1
      %s21 = ssub.s32 %s15, 2
      %s31 = sadd.s32 1, %s24
      %p32 = scmp.ge.s32.totalorder %s31, 1
      %s33 = scalar_select %p32, 0, %s31
      %s34 = sadd.s32 1, %s23
      %s35 = scalar_select %p32, %s34, %s23
      %p36 = scmp.ge.s32.totalorder %s35, 1
      %s37 = scalar_select %p36, 0, %s35
      %s38 = sadd.s32 1, %s22
      %s39 = scalar_select %p36, %s38, %s22
      %p40 = scmp.ge.s32.totalorder %s39, 32
      %s41 = scalar_select %p40, 0, %s39
      %s42 = ssub.s32 %s22, %s41
      %s43 = ssub.s32 %s24, %s33
      %s44 = sor.u32 %s42, %s43
      %p45 = scmp.eq.s32.totalorder %s44, 0
      %s47 = sadd.s32 %s46, 1
      %s48 = scalar_select %p45, %s46, %s47
      %p51 = pneg %p45
      %p52 = scmp.eq.s32.totalorder %s15, 31
      %p53 = por %p51, %p52
      %p54 = scmp.ne.s32.totalorder %s46, %s49
      %p55 = scmp.eq.s32.totalorder %s15, 0
      %p56 = por %p54, %p55
      %p57 = scmp.ne.s32.totalorder %s46, %s49
      %p58 = scmp.eq.s32.totalorder %s20, 31
      %p59 = por %p57, %p58
      %p60 = scmp.ne.s32.totalorder %s49, %s50
      %p61 = scmp.eq.s32.totalorder %s20, 0
      %p62 = por %p60, %p61
      %p63 = scmp.ne.s32.totalorder %s49, %s50
      %p64 = scmp.eq.s32.totalorder %s21, 31
      %p65 = por %p63, %p64
      %p67 = scmp.ne.s32.totalorder %s50, %s66
      %p68 = scmp.eq.s32.totalorder %s21, 0
      %p69 = por %p67, %p68
      %s70 = ssub.s32 %s24, %s33
      %s71 = ssub.s32 %s23, %s37
      %s72 = sor.u32 %s70, %s71
      %p73 = scmp.eq.s32.totalorder %s72, 0
      %s75 = sadd.s32 %s74, 1
      %s76 = scalar_select %p73, %s74, %s75
      %p79 = pneg %p73
      %p80 = scmp.eq.s32.totalorder %s15, 31
      %p81 = por %p79, %p80
      %p82 = scmp.ne.s32.totalorder %s74, %s77
      %p83 = scmp.eq.s32.totalorder %s15, 0
      %p84 = por %p82, %p83
      %p85 = scmp.ne.s32.totalorder %s74, %s77
      %p86 = scmp.eq.s32.totalorder %s20, 31
      %p87 = por %p85, %p86
      %p88 = scmp.ne.s32.totalorder %s77, %s78
      %p89 = scmp.eq.s32.totalorder %s20, 0
      %p90 = por %p88, %p89
      %p91 = scmp.ne.s32.totalorder %s77, %s78
      %p92 = scmp.eq.s32.totalorder %s21, 31
      %p93 = por %p91, %p92
      %p95 = scmp.ne.s32.totalorder %s78, %s94
      %p96 = scmp.eq.s32.totalorder %s21, 0
      %p97 = por %p95, %p96
      %s98 = ssub.s32 %s22, %s41
      %s99 = ssub.s32 %s23, %s37
      %s100 = sor.u32 %s98, %s99
      %p101 = scmp.eq.s32.totalorder %s100, 0
      %s103 = sadd.s32 %s102, 1
      %s104 = scalar_select %p101, %s102, %s103
      %p107 = pneg %p101
      %p108 = scmp.eq.s32.totalorder %s15, 31
      %p109 = por %p107, %p108
      %p110 = scmp.ne.s32.totalorder %s102, %s105
      %p111 = scmp.eq.s32.totalorder %s15, 0
      %p112 = por %p110, %p111
      %p113 = scmp.ne.s32.totalorder %s102, %s105
      %p114 = scmp.eq.s32.totalorder %s20, 31
      %p115 = por %p113, %p114
      %p116 = scmp.ne.s32.totalorder %s105, %s106
      %p117 = scmp.eq.s32.totalorder %s20, 0
      %p118 = por %p116, %p117
      %p119 = scmp.ne.s32.totalorder %s105, %s106
      %p120 = scmp.eq.s32.totalorder %s21, 31
      %p121 = por %p119, %p120
      %p123 = scmp.ne.s32.totalorder %s106, %s122
      %p124 = scmp.eq.s32.totalorder %s21, 0
      %p125 = por %p123, %p124
      %p126 = scmp.le.s32.totalorder 1, %s15
      %p127 = scmp.lt.s32.totalorder %s15, 33
      %p128 = pnand %p126, %p127
      %p129 = pneg %p128
      // Predicated region
      $region9: #{tpu_custom_call.1} parent=5 // pred_check
        _
      $region10: #{tpu_custom_call.1} parent=5 // pred_check_branch
        %131 = sbr.rel (%p128) target = $region12
      $region11: #{tpu_custom_call.1} parent=5 // pred_region
        %s132 = ssub.s32 %s15, 1
        // Predicated region
        $region13: #{tpu_custom_call.1} parent=11 // pred_check
          %p133 = pneg %p90
        $region14: #{tpu_custom_call.1} parent=11 // pred_check_branch
          %135 = sbr.rel (%p133) target = $region16
        $region15: #{tpu_custom_call.1} parent=11 // pred_region
          %s136 = smul.u32 16, %s27
          %s138 = ssub.s32 1024, 1024
          %139 = vsyncadd [#allocation7], %s138
          %s140 = sadd.s32 %s26, %s136
          %s141 = smul.addr %s140, 64
          %s142 = scalar_lea.hbm %s1, %s141
          %s143 = sshll.u32 [#allocation6], 4
          %s144 = int_to_ptr.vmem [resolvable:$true] %s143
          %149 = dma.hbm_to_vmem [thread:$0]  %s142, 1024, %s144, [#allocation7], 64, 64, 4
        $region16: #{tpu_custom_call.1} parent=11 // pred_fallthru
          _
      $region12: #{tpu_custom_call.1} parent=5 // pred_fallthru
        _
      %p150 = scmp.lt.s32.totalorder %s15, 32
      // Predicated region
      $region17: #{tpu_custom_call.1} parent=5 // pred_check
        %p151 = pneg %p150
      $region18: #{tpu_custom_call.1} parent=5 // pred_check_branch
        %153 = sbr.rel (%p151) target = $region20
      $region19: #{tpu_custom_call.1} parent=5 // pred_region
        // Predicated region
        $region21: #{tpu_custom_call.1} parent=19 // pred_check
          %p154 = pneg %p56
        $region22: #{tpu_custom_call.1} parent=19 // pred_check_branch
          %156 = sbr.rel (%p154) target = $region24
        $region23: #{tpu_custom_call.1} parent=19 // pred_region
          %s157 = sand.u32 %s46, 1
          %s158 = scalar_lea.sflag [#allocation4], %s157
          %s159 = sand.u32 %s46, 1
          %s160 = smul.addr %s159, 256
          %s161 = scalar_lea.vmem [#allocation3], %s160
          %s162 = smul.u32 64, %s22
          %s164 = ssub.s32 4096, 4096
          %165 = vsyncadd %s158, %s164
          %s166 = sadd.s32 %s24, %s162
          %s167 = smul.addr %s166, 64
          %s168 = scalar_lea.hbm %s0, %s167
          %s169 = sshll.u32 %s161, 4
          %s170 = int_to_ptr.vmem [resolvable:$true] %s169
          %175 = dma.hbm_to_vmem [thread:$0]  %s168, 4096, %s170, %s158, 64, 64, 4
        $region24: #{tpu_custom_call.1} parent=19 // pred_fallthru
          _
      $region20: #{tpu_custom_call.1} parent=5 // pred_fallthru
        _
      %p176 = scmp.le.s32.totalorder 1, %s15
      %p177 = scmp.lt.s32.totalorder %s15, 33
      %p178 = pnand %p176, %p177
      %p179 = pneg %p178
      // Predicated region
      $region25: #{tpu_custom_call.1} parent=5 // pred_check
        _
      $region26: #{tpu_custom_call.1} parent=5 // pred_check_branch
        %181 = sbr.rel (%p178) target = $region28
      $region27: #{tpu_custom_call.1} parent=5 // pred_region
        %s182 = ssub.s32 %s15, 1
        %s183 = sand.u32 %s49, 1
        %s184 = scalar_lea.sflag [#allocation4], %s183
        %s185 = sand.u32 %s49, 1
        %s186 = smul.addr %s185, 256
        %s187 = scalar_lea.vmem [#allocation3], %s186
        // Predicated region
        $region29: #{tpu_custom_call.1} parent=27 // pred_check
          %p188 = pneg %p62
        $region30: #{tpu_custom_call.1} parent=27 // pred_check_branch
          %190 = sbr.rel (%p188) target = $region32
        $region31: #{tpu_custom_call.1} parent=27 // pred_region
          %191 = dma.done %s184, 4096
        $region32: #{tpu_custom_call.1} parent=27 // pred_fallthru
          _
        // Predicated region
        $region33: #{tpu_custom_call.1} parent=27 // pred_check
          %p192 = pneg %p90
        $region34: #{tpu_custom_call.1} parent=27 // pred_check_branch
          %194 = sbr.rel (%p192) target = $region36
        $region35: #{tpu_custom_call.1} parent=27 // pred_region
          %195 = dma.done [#allocation7], 1024
        $region36: #{tpu_custom_call.1} parent=27 // pred_fallthru
          _
        %s196 = sand.u32 %s49, 1
        %s197 = scalar_lea.sflag [#allocation4], %s196
        %s198 = sand.u32 %s49, 1
        %s199 = smul.addr %s198, 256
        %s200 = scalar_lea.vmem [#allocation3], %s199
        %p201 = pneg %p62
        %p202 = pneg %p59
        %p203 = pneg %p90
        %p204 = pneg %p87
        %p205 = pneg %p118
        %p206 = pneg %p115
        %s207 = sand.u32 %s105, 1
        %s208 = scalar_lea.sflag [#allocation5], %s207
        %s209 = sand.u32 %s105, 1
        %s210 = smul.addr %s209, 256
        %s211 = scalar_lea.vmem [#allocation8], %s210
        %s212 = smul.u32 64, %s25
        %s213 = smul.u32 16, %s27
        %s214 = smul.u32 64, %s25
        %p216 = scmp.eq.s32.totalorder %s27, 0
        // Predicated region
        $region37: #{tpu_custom_call.1} parent=27 // pred_check
          %p217 = pneg %p216
        $region38: #{tpu_custom_call.1} parent=27 // pred_check_branch
          %219 = sbr.rel (%p217) target = $region40
        $region39: #{tpu_custom_call.1} parent=27 // pred_region
          %220 = vst [vmem:[#allocation2] sm:$0xff] 0.0
          %221 = vst [vmem:[#allocation2 + $0x8] sm:$0xff] 0.0
          %222 = vst [vmem:[#allocation2 + $0x10] sm:$0xff] 0.0
          %223 = vst [vmem:[#allocation2 + $0x18] sm:$0xff] 0.0
          %224 = vst [vmem:[#allocation2 + $0x20] sm:$0xff] 0.0
          %225 = vst [vmem:[#allocation2 + $0x28] sm:$0xff] 0.0
          %226 = vst [vmem:[#allocation2 + $0x30] sm:$0xff] 0.0
          %227 = vst [vmem:[#allocation2 + $0x38] sm:$0xff] 0.0
          %228 = vst [vmem:[#allocation2 + $0x40] sm:$0xff] 0.0
          %229 = vst [vmem:[#allocation2 + $0x48] sm:$0xff] 0.0
          %230 = vst [vmem:[#allocation2 + $0x50] sm:$0xff] 0.0
          %231 = vst [vmem:[#allocation2 + $0x58] sm:$0xff] 0.0
          %232 = vst [vmem:[#allocation2 + $0x60] sm:$0xff] 0.0
          %233 = vst [vmem:[#allocation2 + $0x68] sm:$0xff] 0.0
          %234 = vst [vmem:[#allocation2 + $0x70] sm:$0xff] 0.0
          %235 = vst [vmem:[#allocation2 + $0x78] sm:$0xff] 0.0
          %236 = vst [vmem:[#allocation2 + $0x80] sm:$0xff] 0.0
          %237 = vst [vmem:[#allocation2 + $0x88] sm:$0xff] 0.0
          %238 = vst [vmem:[#allocation2 + $0x90] sm:$0xff] 0.0
          %239 = vst [vmem:[#allocation2 + $0x98] sm:$0xff] 0.0
          %240 = vst [vmem:[#allocation2 + $0xa0] sm:$0xff] 0.0
          %241 = vst [vmem:[#allocation2 + $0xa8] sm:$0xff] 0.0
          %242 = vst [vmem:[#allocation2 + $0xb0] sm:$0xff] 0.0
          %243 = vst [vmem:[#allocation2 + $0xb8] sm:$0xff] 0.0
          %244 = vst [vmem:[#allocation2 + $0xc0] sm:$0xff] 0.0
          %245 = vst [vmem:[#allocation2 + $0xc8] sm:$0xff] 0.0
          %246 = vst [vmem:[#allocation2 + $0xd0] sm:$0xff] 0.0
          %247 = vst [vmem:[#allocation2 + $0xd8] sm:$0xff] 0.0
          %248 = vst [vmem:[#allocation2 + $0xe0] sm:$0xff] 0.0
          %249 = vst [vmem:[#allocation2 + $0xe8] sm:$0xff] 0.0
          %250 = vst [vmem:[#allocation2 + $0xf0] sm:$0xff] 0.0
          %251 = vst [vmem:[#allocation2 + $0xf8] sm:$0xff] 0.0
          %252 = vst [vmem:[#allocation2 + $0x100] sm:$0xff] 0.0
          %253 = vst [vmem:[#allocation2 + $0x108] sm:$0xff] 0.0
          %254 = vst [vmem:[#allocation2 + $0x110] sm:$0xff] 0.0
          %255 = vst [vmem:[#allocation2 + $0x118] sm:$0xff] 0.0
          %256 = vst [vmem:[#allocation2 + $0x120] sm:$0xff] 0.0
          %257 = vst [vmem:[#allocation2 + $0x128] sm:$0xff] 0.0
          %258 = vst [vmem:[#allocation2 + $0x130] sm:$0xff] 0.0
          %259 = vst [vmem:[#allocation2 + $0x138] sm:$0xff] 0.0
          %260 = vst [vmem:[#allocation2 + $0x140] sm:$0xff] 0.0
          %261 = vst [vmem:[#allocation2 + $0x148] sm:$0xff] 0.0
          %262 = vst [vmem:[#allocation2 + $0x150] sm:$0xff] 0.0
          %263 = vst [vmem:[#allocation2 + $0x158] sm:$0xff] 0.0
          %264 = vst [vmem:[#allocation2 + $0x160] sm:$0xff] 0.0
          %265 = vst [vmem:[#allocation2 + $0x168] sm:$0xff] 0.0
          %266 = vst [vmem:[#allocation2 + $0x170] sm:$0xff] 0.0
          %267 = vst [vmem:[#allocation2 + $0x178] sm:$0xff] 0.0
          %268 = vst [vmem:[#allocation2 + $0x180] sm:$0xff] 0.0
          %269 = vst [vmem:[#allocation2 + $0x188] sm:$0xff] 0.0
          %270 = vst [vmem:[#allocation2 + $0x190] sm:$0xff] 0.0
          %271 = vst [vmem:[#allocation2 + $0x198] sm:$0xff] 0.0
          %272 = vst [vmem:[#allocation2 + $0x1a0] sm:$0xff] 0.0
          %273 = vst [vmem:[#allocation2 + $0x1a8] sm:$0xff] 0.0
          %274 = vst [vmem:[#allocation2 + $0x1b0] sm:$0xff] 0.0
          %275 = vst [vmem:[#allocation2 + $0x1b8] sm:$0xff] 0.0
          %276 = vst [vmem:[#allocation2 + $0x1c0] sm:$0xff] 0.0
          %277 = vst [vmem:[#allocation2 + $0x1c8] sm:$0xff] 0.0
          %278 = vst [vmem:[#allocation2 + $0x1d0] sm:$0xff] 0.0
          %279 = vst [vmem:[#allocation2 + $0x1d8] sm:$0xff] 0.0
          %280 = vst [vmem:[#allocation2 + $0x1e0] sm:$0xff] 0.0
          %281 = vst [vmem:[#allocation2 + $0x1e8] sm:$0xff] 0.0
          %282 = vst [vmem:[#allocation2 + $0x1f0] sm:$0xff] 0.0
          %283 = vst [vmem:[#allocation2 + $0x1f8] sm:$0xff] 0.0
        $region40: #{tpu_custom_call.1} parent=27 // pred_fallthru
          _
        %v284 = vld [vmem:[#allocation2] sm:$0xff]
        %v285 = vld [vmem:[#allocation2 + $0x8] sm:$0xff]
        %v286 = vld [vmem:[#allocation2 + $0x10] sm:$0xff]
        %v287 = vld [vmem:[#allocation2 + $0x18] sm:$0xff]
        %v288 = vld [vmem:[#allocation2 + $0x20] sm:$0xff]
        %v289 = vld [vmem:[#allocation2 + $0x28] sm:$0xff]
        %v290 = vld [vmem:[#allocation2 + $0x30] sm:$0xff]
        %v291 = vld [vmem:[#allocation2 + $0x38] sm:$0xff]
        %v292 = vld [vmem:[#allocation2 + $0x40] sm:$0xff]
        %v293 = vld [vmem:[#allocation2 + $0x48] sm:$0xff]
        %v294 = vld [vmem:[#allocation2 + $0x50] sm:$0xff]
        %v295 = vld [vmem:[#allocation2 + $0x58] sm:$0xff]
        %v296 = vld [vmem:[#allocation2 + $0x60] sm:$0xff]
        %v297 = vld [vmem:[#allocation2 + $0x68] sm:$0xff]
        %v298 = vld [vmem:[#allocation2 + $0x70] sm:$0xff]
        %v299 = vld [vmem:[#allocation2 + $0x78] sm:$0xff]
        %v300 = vld [vmem:[#allocation2 + $0x80] sm:$0xff]
        %v301 = vld [vmem:[#allocation2 + $0x88] sm:$0xff]
        %v302 = vld [vmem:[#allocation2 + $0x90] sm:$0xff]
        %v303 = vld [vmem:[#allocation2 + $0x98] sm:$0xff]
        %v304 = vld [vmem:[#allocation2 + $0xa0] sm:$0xff]
        %v305 = vld [vmem:[#allocation2 + $0xa8] sm:$0xff]
        %v306 = vld [vmem:[#allocation2 + $0xb0] sm:$0xff]
        %v307 = vld [vmem:[#allocation2 + $0xb8] sm:$0xff]
        %v308 = vld [vmem:[#allocation2 + $0xc0] sm:$0xff]
        %v309 = vld [vmem:[#allocation2 + $0xc8] sm:$0xff]
        %v310 = vld [vmem:[#allocation2 + $0xd0] sm:$0xff]
        %v311 = vld [vmem:[#allocation2 + $0xd8] sm:$0xff]
        %v312 = vld [vmem:[#allocation2 + $0xe0] sm:$0xff]
        %v313 = vld [vmem:[#allocation2 + $0xe8] sm:$0xff]
        %v314 = vld [vmem:[#allocation2 + $0xf0] sm:$0xff]
        %v315 = vld [vmem:[#allocation2 + $0xf8] sm:$0xff]
        %v316 = vld [vmem:[#allocation2 + $0x100] sm:$0xff]
        %v317 = vld [vmem:[#allocation2 + $0x108] sm:$0xff]
        %v318 = vld [vmem:[#allocation2 + $0x110] sm:$0xff]
        %v319 = vld [vmem:[#allocation2 + $0x118] sm:$0xff]
        %v320 = vld [vmem:[#allocation2 + $0x120] sm:$0xff]
        %v321 = vld [vmem:[#allocation2 + $0x128] sm:$0xff]
        %v322 = vld [vmem:[#allocation2 + $0x130] sm:$0xff]
        %v323 = vld [vmem:[#allocation2 + $0x138] sm:$0xff]
        %v324 = vld [vmem:[#allocation2 + $0x140] sm:$0xff]
        %v325 = vld [vmem:[#allocation2 + $0x148] sm:$0xff]
        %v326 = vld [vmem:[#allocation2 + $0x150] sm:$0xff]
        %v327 = vld [vmem:[#allocation2 + $0x158] sm:$0xff]
        %v328 = vld [vmem:[#allocation2 + $0x160] sm:$0xff]
        %v329 = vld [vmem:[#allocation2 + $0x168] sm:$0xff]
        %v330 = vld [vmem:[#allocation2 + $0x170] sm:$0xff]
        %v331 = vld [vmem:[#allocation2 + $0x178] sm:$0xff]
        %v332 = vld [vmem:[#allocation2 + $0x180] sm:$0xff]
        %v333 = vld [vmem:[#allocation2 + $0x188] sm:$0xff]
        %v334 = vld [vmem:[#allocation2 + $0x190] sm:$0xff]
        %v335 = vld [vmem:[#allocation2 + $0x198] sm:$0xff]
        %v336 = vld [vmem:[#allocation2 + $0x1a0] sm:$0xff]
        %v337 = vld [vmem:[#allocation2 + $0x1a8] sm:$0xff]
        %v338 = vld [vmem:[#allocation2 + $0x1b0] sm:$0xff]
        %v339 = vld [vmem:[#allocation2 + $0x1b8] sm:$0xff]
        %v340 = vld [vmem:[#allocation2 + $0x1c0] sm:$0xff]
        %v341 = vld [vmem:[#allocation2 + $0x1c8] sm:$0xff]
        %v342 = vld [vmem:[#allocation2 + $0x1d0] sm:$0xff]
        %v343 = vld [vmem:[#allocation2 + $0x1d8] sm:$0xff]
        %v344 = vld [vmem:[#allocation2 + $0x1e0] sm:$0xff]
        %v345 = vld [vmem:[#allocation2 + $0x1e8] sm:$0xff]
        %v346 = vld [vmem:[#allocation2 + $0x1f0] sm:$0xff]
        %v347 = vld [vmem:[#allocation2 + $0x1f8] sm:$0xff]
        %v348 = vld [vmem:[%s187] sm:$0xf]
        %v349 = vld [vmem:[%s187 + $0x4] sm:$0xf]
        %v350 = vld [vmem:[%s187 + $0x8] sm:$0xf]
        %v351 = vld [vmem:[%s187 + $0xc] sm:$0xf]
        %v352 = vld [vmem:[%s187 + $0x10] sm:$0xf]
        %v353 = vld [vmem:[%s187 + $0x14] sm:$0xf]
        %v354 = vld [vmem:[%s187 + $0x18] sm:$0xf]
        %v355 = vld [vmem:[%s187 + $0x1c] sm:$0xf]
        %v356 = vld [vmem:[%s187 + $0x20] sm:$0xf]
        %v357 = vld [vmem:[%s187 + $0x24] sm:$0xf]
        %v358 = vld [vmem:[%s187 + $0x28] sm:$0xf]
        %v359 = vld [vmem:[%s187 + $0x2c] sm:$0xf]
        %v360 = vld [vmem:[%s187 + $0x30] sm:$0xf]
        %v361 = vld [vmem:[%s187 + $0x34] sm:$0xf]
        %v362 = vld [vmem:[%s187 + $0x38] sm:$0xf]
        %v363 = vld [vmem:[%s187 + $0x3c] sm:$0xf]
        %v364 = vld [vmem:[%s187 + $0x40] sm:$0xf]
        %v365 = vld [vmem:[%s187 + $0x44] sm:$0xf]
        %v366 = vld [vmem:[%s187 + $0x48] sm:$0xf]
        %v367 = vld [vmem:[%s187 + $0x4c] sm:$0xf]
        %v368 = vld [vmem:[%s187 + $0x50] sm:$0xf]
        %v369 = vld [vmem:[%s187 + $0x54] sm:$0xf]
        %v370 = vld [vmem:[%s187 + $0x58] sm:$0xf]
        %v371 = vld [vmem:[%s187 + $0x5c] sm:$0xf]
        %v372 = vld [vmem:[%s187 + $0x60] sm:$0xf]
        %v373 = vld [vmem:[%s187 + $0x64] sm:$0xf]
        %v374 = vld [vmem:[%s187 + $0x68] sm:$0xf]
        %v375 = vld [vmem:[%s187 + $0x6c] sm:$0xf]
        %v376 = vld [vmem:[%s187 + $0x70] sm:$0xf]
        %v377 = vld [vmem:[%s187 + $0x74] sm:$0xf]
        %v378 = vld [vmem:[%s187 + $0x78] sm:$0xf]
        %v379 = vld [vmem:[%s187 + $0x7c] sm:$0xf]
        %v380 = vld [vmem:[%s187 + $0x80] sm:$0xf]
        %v381 = vld [vmem:[%s187 + $0x84] sm:$0xf]
        %v382 = vld [vmem:[%s187 + $0x88] sm:$0xf]
        %v383 = vld [vmem:[%s187 + $0x8c] sm:$0xf]
        %v384 = vld [vmem:[%s187 + $0x90] sm:$0xf]
        %v385 = vld [vmem:[%s187 + $0x94] sm:$0xf]
        %v386 = vld [vmem:[%s187 + $0x98] sm:$0xf]
        %v387 = vld [vmem:[%s187 + $0x9c] sm:$0xf]
        %v388 = vld [vmem:[%s187 + $0xa0] sm:$0xf]
        %v389 = vld [vmem:[%s187 + $0xa4] sm:$0xf]
        %v390 = vld [vmem:[%s187 + $0xa8] sm:$0xf]
        %v391 = vld [vmem:[%s187 + $0xac] sm:$0xf]
        %v392 = vld [vmem:[%s187 + $0xb0] sm:$0xf]
        %v393 = vld [vmem:[%s187 + $0xb4] sm:$0xf]
        %v394 = vld [vmem:[%s187 + $0xb8] sm:$0xf]
        %v395 = vld [vmem:[%s187 + $0xbc] sm:$0xf]
        %v396 = vld [vmem:[%s187 + $0xc0] sm:$0xf]
        %v397 = vld [vmem:[%s187 + $0xc4] sm:$0xf]
        %v398 = vld [vmem:[%s187 + $0xc8] sm:$0xf]
        %v399 = vld [vmem:[%s187 + $0xcc] sm:$0xf]
        %v400 = vld [vmem:[%s187 + $0xd0] sm:$0xf]
        %v401 = vld [vmem:[%s187 + $0xd4] sm:$0xf]
        %v402 = vld [vmem:[%s187 + $0xd8] sm:$0xf]
        %v403 = vld [vmem:[%s187 + $0xdc] sm:$0xf]
        %v404 = vld [vmem:[%s187 + $0xe0] sm:$0xf]
        %v405 = vld [vmem:[%s187 + $0xe4] sm:$0xf]
        %v406 = vld [vmem:[%s187 + $0xe8] sm:$0xf]
        %v407 = vld [vmem:[%s187 + $0xec] sm:$0xf]
        %v408 = vld [vmem:[%s187 + $0xf0] sm:$0xf]
        %v409 = vld [vmem:[%s187 + $0xf4] sm:$0xf]
        %v410 = vld [vmem:[%s187 + $0xf8] sm:$0xf]
        %v411 = vld [vmem:[%s187 + $0xfc] sm:$0xf]
        %v412 = vld [vmem:[#allocation6] sm:$0xf]
        %v413 = vld [vmem:[#allocation6 + $0x4] sm:$0xf]
        %v414 = vld [vmem:[#allocation6 + $0x8] sm:$0xf]
        %v415 = vld [vmem:[#allocation6 + $0xc] sm:$0xf]
        %v416 = vld [vmem:[#allocation6 + $0x10] sm:$0xf]
        %v417 = vld [vmem:[#allocation6 + $0x14] sm:$0xf]
        %v418 = vld [vmem:[#allocation6 + $0x18] sm:$0xf]
        %v419 = vld [vmem:[#allocation6 + $0x1c] sm:$0xf]
        %v420 = vld [vmem:[#allocation6 + $0x20] sm:$0xf]
        %v421 = vld [vmem:[#allocation6 + $0x24] sm:$0xf]
        %v422 = vld [vmem:[#allocation6 + $0x28] sm:$0xf]
        %v423 = vld [vmem:[#allocation6 + $0x2c] sm:$0xf]
        %v424 = vld [vmem:[#allocation6 + $0x30] sm:$0xf]
        %v425 = vld [vmem:[#allocation6 + $0x34] sm:$0xf]
        %v426 = vld [vmem:[#allocation6 + $0x38] sm:$0xf]
        %v427 = vld [vmem:[#allocation6 + $0x3c] sm:$0xf]
        %v492 = vunpack.c.l.b16 %v348
        %v493 = vunpack.c.l.b16 %v349
        %v494 = vunpack.c.l.b16 %v350
        %v495 = vunpack.c.l.b16 %v351
        %v496 = vunpack.c.l.b16 %v352
        %v497 = vunpack.c.l.b16 %v353
        %v498 = vunpack.c.l.b16 %v354
        %v499 = vunpack.c.l.b16 %v355
        %v500 = vunpack.c.l.b16 %v356
        %v501 = vunpack.c.l.b16 %v357
        %v502 = vunpack.c.l.b16 %v358
        %v503 = vunpack.c.l.b16 %v359
        %v504 = vunpack.c.l.b16 %v360
        %v505 = vunpack.c.l.b16 %v361
        %v506 = vunpack.c.l.b16 %v362
        %v507 = vunpack.c.l.b16 %v363
        %v508 = vunpack.c.l.b16 %v364
        %v509 = vunpack.c.l.b16 %v365
        %v510 = vunpack.c.l.b16 %v366
        %v511 = vunpack.c.l.b16 %v367
        %v512 = vunpack.c.l.b16 %v368
        %v513 = vunpack.c.l.b16 %v369
        %v514 = vunpack.c.l.b16 %v370
        %v515 = vunpack.c.l.b16 %v371
        %v516 = vunpack.c.l.b16 %v372
        %v517 = vunpack.c.l.b16 %v373
        %v518 = vunpack.c.l.b16 %v374
        %v519 = vunpack.c.l.b16 %v375
        %v520 = vunpack.c.l.b16 %v376
        %v521 = vunpack.c.l.b16 %v377
        %v522 = vunpack.c.l.b16 %v378
        %v523 = vunpack.c.l.b16 %v379
        %v524 = vunpack.c.l.b16 %v380
        %v525 = vunpack.c.l.b16 %v381
        %v526 = vunpack.c.l.b16 %v382
        %v527 = vunpack.c.l.b16 %v383
        %v528 = vunpack.c.l.b16 %v384
        %v529 = vunpack.c.l.b16 %v385
        %v530 = vunpack.c.l.b16 %v386
        %v531 = vunpack.c.l.b16 %v387
        %v532 = vunpack.c.l.b16 %v388
        %v533 = vunpack.c.l.b16 %v389
        %v534 = vunpack.c.l.b16 %v390
        %v535 = vunpack.c.l.b16 %v391
        %v536 = vunpack.c.l.b16 %v392
        %v537 = vunpack.c.l.b16 %v393
        %v538 = vunpack.c.l.b16 %v394
        %v539 = vunpack.c.l.b16 %v395
        %v540 = vunpack.c.l.b16 %v396
        %v541 = vunpack.c.l.b16 %v397
        %v542 = vunpack.c.l.b16 %v398
        %v543 = vunpack.c.l.b16 %v399
        %v544 = vunpack.c.l.b16 %v400
        %v545 = vunpack.c.l.b16 %v401
        %v546 = vunpack.c.l.b16 %v402
        %v547 = vunpack.c.l.b16 %v403
        %v548 = vunpack.c.l.b16 %v404
        %v549 = vunpack.c.l.b16 %v405
        %v550 = vunpack.c.l.b16 %v406
        %v551 = vunpack.c.l.b16 %v407
        %v552 = vunpack.c.l.b16 %v408
        %v553 = vunpack.c.l.b16 %v409
        %v554 = vunpack.c.l.b16 %v410
        %v555 = vunpack.c.l.b16 %v411
        %v556 = vpack.c.b16 %v493, %v492
        %v557 = vpack.c.b16 %v495, %v494
        %v558 = vpack.c.b16 %v497, %v496
        %v559 = vpack.c.b16 %v499, %v498
        %v560 = vpack.c.b16 %v501, %v500
        %v561 = vpack.c.b16 %v503, %v502
        %v562 = vpack.c.b16 %v505, %v504
        %v563 = vpack.c.b16 %v507, %v506
        %v564 = vpack.c.b16 %v509, %v508
        %v565 = vpack.c.b16 %v511, %v510
        %v566 = vpack.c.b16 %v513, %v512
        %v567 = vpack.c.b16 %v515, %v514
        %v568 = vpack.c.b16 %v517, %v516
        %v569 = vpack.c.b16 %v519, %v518
        %v570 = vpack.c.b16 %v521, %v520
        %v571 = vpack.c.b16 %v523, %v522
        %v572 = vpack.c.b16 %v525, %v524
        %v573 = vpack.c.b16 %v527, %v526
        %v574 = vpack.c.b16 %v529, %v528
        %v575 = vpack.c.b16 %v531, %v530
        %v576 = vpack.c.b16 %v533, %v532
        %v577 = vpack.c.b16 %v535, %v534
        %v578 = vpack.c.b16 %v537, %v536
        %v579 = vpack.c.b16 %v539, %v538
        %v580 = vpack.c.b16 %v541, %v540
        %v581 = vpack.c.b16 %v543, %v542
        %v582 = vpack.c.b16 %v545, %v544
        %v583 = vpack.c.b16 %v547, %v546
        %v584 = vpack.c.b16 %v549, %v548
        %v585 = vpack.c.b16 %v551, %v550
        %v586 = vpack.c.b16 %v553, %v552
        %v587 = vpack.c.b16 %v555, %v554
        %v636 = vunpack.c.l.b16 %v412
        %v637 = vunpack.c.l.b16 %v413
        %v638 = vunpack.c.l.b16 %v414
        %v639 = vunpack.c.l.b16 %v415
        %v640 = vunpack.c.l.b16 %v416
        %v641 = vunpack.c.l.b16 %v417
        %v642 = vunpack.c.l.b16 %v418
        %v643 = vunpack.c.l.b16 %v419
        %v644 = vunpack.c.l.b16 %v420
        %v645 = vunpack.c.l.b16 %v421
        %v646 = vunpack.c.l.b16 %v422
        %v647 = vunpack.c.l.b16 %v423
        %v648 = vunpack.c.l.b16 %v424
        %v649 = vunpack.c.l.b16 %v425
        %v650 = vunpack.c.l.b16 %v426
        %v651 = vunpack.c.l.b16 %v427
        %v652 = vpack.c.b16 %v637, %v636
        %v653 = vpack.c.b16 %v639, %v638
        %v654 = vpack.c.b16 %v641, %v640
        %v655 = vpack.c.b16 %v643, %v642
        %v656 = vpack.c.b16 %v645, %v644
        %v657 = vpack.c.b16 %v647, %v646
        %v658 = vpack.c.b16 %v649, %v648
        %v659 = vpack.c.b16 %v651, %v650
        %668 = vmatprep.subr.bf16.mxu0 0
        %669 = vmatpush1.bf16.msra.mxu0 %v659
        %670 = vmatprep.subr.bf16.mxu0 0
        %671 = vmatpush1.bf16.msra.mxu0 %v658
        %672 = vmatprep.subr.bf16.mxu0 0
        %673 = vmatpush1.bf16.msra.mxu0 %v657
        %674 = vmatprep.subr.bf16.mxu0 0
        %675 = vmatpush1.bf16.msra.mxu0 %v656
        %676 = vmatprep.subr.bf16.mxu0 0
        %677 = vmatpush1.bf16.msra.mxu0 %v655
        %678 = vmatprep.subr.bf16.mxu0 0
        %679 = vmatpush1.bf16.msra.mxu0 %v654
        %680 = vmatprep.subr.bf16.mxu0 0
        %681 = vmatpush1.bf16.msra.mxu0 %v653
        %682 = vmatprep.subr.bf16.mxu0 0
        %683 = vmatpush1.bf16.msra.mxu0 %v652
        %684 = vmatprep.subr.bf16.mxu0 0
        %685 = vmatpush2.bf16.msra.mxu0 0
        %686 = vmatprep.subr.bf16.mxu0 0
        %687 = vmatpush2.bf16.msra.mxu0 0
        %688 = vmatprep.subr.bf16.mxu0 0
        %689 = vmatpush2.bf16.msra.mxu0 0
        %690 = vmatprep.subr.bf16.mxu0 0
        %691 = vmatpush2.bf16.msra.mxu0 0
        %692 = vmatprep.subr.bf16.mxu0 0
        %693 = vmatpush2.bf16.msra.mxu0 0
        %694 = vmatprep.subr.bf16.mxu0 0
        %695 = vmatpush2.bf16.msra.mxu0 0
        %696 = vmatprep.subr.bf16.mxu0 0
        %697 = vmatpush2.bf16.msra.mxu0 0
        %698 = vmatprep.subr.bf16.mxu0 0
        %699 = vmatpush2.bf16.msra.mxu0 0
        %700 = vmatprep.mubr.bf16.mxu0 0
        %701 = vmatmul.mubr.bf16.gmra.mxu0 %v556
        %v702 = vpop.f32.mrf.mxu0
        %v703 = vadd.f32 0.0, %v702
        %v704 = vpop.f32.mrf.mxu0
        %v705 = vpop.f32.mrf.mxu0
        %v706 = vadd.f32 0.0, %v705
        %v707 = vpop.f32.mrf.mxu0
        %708 = vmatprep.mubr.bf16.mxu0 0
        %709 = vmatmul.mubr.bf16.gmra.mxu0 %v557
        %v710 = vpop.f32.mrf.mxu0
        %v711 = vadd.f32 0.0, %v710
        %v712 = vpop.f32.mrf.mxu0
        %v713 = vpop.f32.mrf.mxu0
        %v714 = vadd.f32 0.0, %v713
        %v715 = vpop.f32.mrf.mxu0
        %716 = vmatprep.mubr.bf16.mxu0 0
        %717 = vmatmul.mubr.bf16.gmra.mxu0 %v558
        %v718 = vpop.f32.mrf.mxu0
        %v719 = vadd.f32 0.0, %v718
        %v720 = vpop.f32.mrf.mxu0
        %v721 = vpop.f32.mrf.mxu0
        %v722 = vadd.f32 0.0, %v721
        %v723 = vpop.f32.mrf.mxu0
        %724 = vmatprep.mubr.bf16.mxu0 0
        %725 = vmatmul.mubr.bf16.gmra.mxu0 %v559
        %v726 = vpop.f32.mrf.mxu0
        %v727 = vadd.f32 0.0, %v726
        %v728 = vpop.f32.mrf.mxu0
        %v729 = vpop.f32.mrf.mxu0
        %v730 = vadd.f32 0.0, %v729
        %v731 = vpop.f32.mrf.mxu0
        %732 = vmatprep.mubr.bf16.mxu0 0
        %733 = vmatmul.mubr.bf16.gmra.mxu0 %v560
        %v734 = vpop.f32.mrf.mxu0
        %v735 = vadd.f32 0.0, %v734
        %v736 = vpop.f32.mrf.mxu0
        %v737 = vpop.f32.mrf.mxu0
        %v738 = vadd.f32 0.0, %v737
        %v739 = vpop.f32.mrf.mxu0
        %740 = vmatprep.mubr.bf16.mxu0 0
        %741 = vmatmul.mubr.bf16.gmra.mxu0 %v561
        %v742 = vpop.f32.mrf.mxu0
        %v743 = vadd.f32 0.0, %v742
        %v744 = vpop.f32.mrf.mxu0
        %v745 = vpop.f32.mrf.mxu0
        %v746 = vadd.f32 0.0, %v745
        %v747 = vpop.f32.mrf.mxu0
        %748 = vmatprep.mubr.bf16.mxu0 0
        %749 = vmatmul.mubr.bf16.gmra.mxu0 %v562
        %v750 = vpop.f32.mrf.mxu0
        %v751 = vadd.f32 0.0, %v750
        %v752 = vpop.f32.mrf.mxu0
        %v753 = vpop.f32.mrf.mxu0
        %v754 = vadd.f32 0.0, %v753
        %v755 = vpop.f32.mrf.mxu0
        %756 = vmatprep.mubr.bf16.mxu0 0
        %757 = vmatmul.mubr.bf16.gmra.mxu0 %v563
        %v758 = vpop.f32.mrf.mxu0
        %v759 = vadd.f32 0.0, %v758
        %v760 = vpop.f32.mrf.mxu0
        %v761 = vpop.f32.mrf.mxu0
        %v762 = vadd.f32 0.0, %v761
        %v763 = vpop.f32.mrf.mxu0
        %764 = vmatprep.mubr.bf16.mxu0 0
        %765 = vmatmul.mubr.bf16.gmra.mxu0 %v564
        %v766 = vpop.f32.mrf.mxu0
        %v767 = vadd.f32 0.0, %v766
        %v768 = vpop.f32.mrf.mxu0
        %v769 = vpop.f32.mrf.mxu0
        %v770 = vadd.f32 0.0, %v769
        %v771 = vpop.f32.mrf.mxu0
        %772 = vmatprep.mubr.bf16.mxu0 0
        %773 = vmatmul.mubr.bf16.gmra.mxu0 %v565
        %v774 = vpop.f32.mrf.mxu0
        %v775 = vadd.f32 0.0, %v774
        %v776 = vpop.f32.mrf.mxu0
        %v777 = vpop.f32.mrf.mxu0
        %v778 = vadd.f32 0.0, %v777
        %v779 = vpop.f32.mrf.mxu0
        %780 = vmatprep.mubr.bf16.mxu0 0
        %781 = vmatmul.mubr.bf16.gmra.mxu0 %v566
        %v782 = vpop.f32.mrf.mxu0
        %v783 = vadd.f32 0.0, %v782
        %v784 = vpop.f32.mrf.mxu0
        %v785 = vpop.f32.mrf.mxu0
        %v786 = vadd.f32 0.0, %v785
        %v787 = vpop.f32.mrf.mxu0
        %788 = vmatprep.mubr.bf16.mxu0 0
        %789 = vmatmul.mubr.bf16.gmra.mxu0 %v567
        %v790 = vpop.f32.mrf.mxu0
        %v791 = vadd.f32 0.0, %v790
        %v792 = vpop.f32.mrf.mxu0
        %v793 = vpop.f32.mrf.mxu0
        %v794 = vadd.f32 0.0, %v793
        %v795 = vpop.f32.mrf.mxu0
        %796 = vmatprep.mubr.bf16.mxu0 0
        %797 = vmatmul.mubr.bf16.gmra.mxu0 %v568
        %v798 = vpop.f32.mrf.mxu0
        %v799 = vadd.f32 0.0, %v798
        %v800 = vpop.f32.mrf.mxu0
        %v801 = vpop.f32.mrf.mxu0
        %v802 = vadd.f32 0.0, %v801
        %v803 = vpop.f32.mrf.mxu0
        %804 = vmatprep.mubr.bf16.mxu0 0
        %805 = vmatmul.mubr.bf16.gmra.mxu0 %v569
        %v806 = vpop.f32.mrf.mxu0
        %v807 = vadd.f32 0.0, %v806
        %v808 = vpop.f32.mrf.mxu0
        %v809 = vpop.f32.mrf.mxu0
        %v810 = vadd.f32 0.0, %v809
        %v811 = vpop.f32.mrf.mxu0
        %812 = vmatprep.mubr.bf16.mxu0 0
        %813 = vmatmul.mubr.bf16.gmra.mxu0 %v570
        %v814 = vpop.f32.mrf.mxu0
        %v815 = vadd.f32 0.0, %v814
        %v816 = vpop.f32.mrf.mxu0
        %v817 = vpop.f32.mrf.mxu0
        %v818 = vadd.f32 0.0, %v817
        %v819 = vpop.f32.mrf.mxu0
        %820 = vmatprep.mubr.bf16.mxu0 0
        %821 = vmatmul.mubr.bf16.gmra.mxu0 %v571
        %v822 = vpop.f32.mrf.mxu0
        %v823 = vadd.f32 0.0, %v822
        %v824 = vpop.f32.mrf.mxu0
        %v825 = vpop.f32.mrf.mxu0
        %v826 = vadd.f32 0.0, %v825
        %v827 = vpop.f32.mrf.mxu0
        %828 = vmatprep.mubr.bf16.mxu0 0
        %829 = vmatmul.mubr.bf16.gmra.mxu0 %v572
        %v830 = vpop.f32.mrf.mxu0
        %v831 = vadd.f32 0.0, %v830
        %v832 = vpop.f32.mrf.mxu0
        %v833 = vpop.f32.mrf.mxu0
        %v834 = vadd.f32 0.0, %v833
        %v835 = vpop.f32.mrf.mxu0
        %836 = vmatprep.mubr.bf16.mxu0 0
        %837 = vmatmul.mubr.bf16.gmra.mxu0 %v573
        %v838 = vpop.f32.mrf.mxu0
        %v839 = vadd.f32 0.0, %v838
        %v840 = vpop.f32.mrf.mxu0
        %v841 = vpop.f32.mrf.mxu0
        %v842 = vadd.f32 0.0, %v841
        %v843 = vpop.f32.mrf.mxu0
        %844 = vmatprep.mubr.bf16.mxu0 0
        %845 = vmatmul.mubr.bf16.gmra.mxu0 %v574
        %v846 = vpop.f32.mrf.mxu0
        %v847 = vadd.f32 0.0, %v846
        %v848 = vpop.f32.mrf.mxu0
        %v849 = vpop.f32.mrf.mxu0
        %v850 = vadd.f32 0.0, %v849
        %v851 = vpop.f32.mrf.mxu0
        %852 = vmatprep.mubr.bf16.mxu0 0
        %853 = vmatmul.mubr.bf16.gmra.mxu0 %v575
        %v854 = vpop.f32.mrf.mxu0
        %v855 = vadd.f32 0.0, %v854
        %v856 = vpop.f32.mrf.mxu0
        %v857 = vpop.f32.mrf.mxu0
        %v858 = vadd.f32 0.0, %v857
        %v859 = vpop.f32.mrf.mxu0
        %860 = vmatprep.mubr.bf16.mxu0 0
        %861 = vmatmul.mubr.bf16.gmra.mxu0 %v576
        %v862 = vpop.f32.mrf.mxu0
        %v863 = vadd.f32 0.0, %v862
        %v864 = vpop.f32.mrf.mxu0
        %v865 = vpop.f32.mrf.mxu0
        %v866 = vadd.f32 0.0, %v865
        %v867 = vpop.f32.mrf.mxu0
        %868 = vmatprep.mubr.bf16.mxu0 0
        %869 = vmatmul.mubr.bf16.gmra.mxu0 %v577
        %v870 = vpop.f32.mrf.mxu0
        %v871 = vadd.f32 0.0, %v870
        %v872 = vpop.f32.mrf.mxu0
        %v873 = vpop.f32.mrf.mxu0
        %v874 = vadd.f32 0.0, %v873
        %v875 = vpop.f32.mrf.mxu0
        %876 = vmatprep.mubr.bf16.mxu0 0
        %877 = vmatmul.mubr.bf16.gmra.mxu0 %v578
        %v878 = vpop.f32.mrf.mxu0
        %v879 = vadd.f32 0.0, %v878
        %v880 = vpop.f32.mrf.mxu0
        %v881 = vpop.f32.mrf.mxu0
        %v882 = vadd.f32 0.0, %v881
        %v883 = vpop.f32.mrf.mxu0
        %884 = vmatprep.mubr.bf16.mxu0 0
        %885 = vmatmul.mubr.bf16.gmra.mxu0 %v579
        %v886 = vpop.f32.mrf.mxu0
        %v887 = vadd.f32 0.0, %v886
        %v888 = vpop.f32.mrf.mxu0
        %v889 = vpop.f32.mrf.mxu0
        %v890 = vadd.f32 0.0, %v889
        %v891 = vpop.f32.mrf.mxu0
        %892 = vmatprep.mubr.bf16.mxu0 0
        %893 = vmatmul.mubr.bf16.gmra.mxu0 %v580
        %v894 = vpop.f32.mrf.mxu0
        %v895 = vadd.f32 0.0, %v894
        %v896 = vpop.f32.mrf.mxu0
        %v897 = vpop.f32.mrf.mxu0
        %v898 = vadd.f32 0.0, %v897
        %v899 = vpop.f32.mrf.mxu0
        %900 = vmatprep.mubr.bf16.mxu0 0
        %901 = vmatmul.mubr.bf16.gmra.mxu0 %v581
        %v902 = vpop.f32.mrf.mxu0
        %v903 = vadd.f32 0.0, %v902
        %v904 = vpop.f32.mrf.mxu0
        %v905 = vpop.f32.mrf.mxu0
        %v906 = vadd.f32 0.0, %v905
        %v907 = vpop.f32.mrf.mxu0
        %908 = vmatprep.mubr.bf16.mxu0 0
        %909 = vmatmul.mubr.bf16.gmra.mxu0 %v582
        %v910 = vpop.f32.mrf.mxu0
        %v911 = vadd.f32 0.0, %v910
        %v912 = vpop.f32.mrf.mxu0
        %v913 = vpop.f32.mrf.mxu0
        %v914 = vadd.f32 0.0, %v913
        %v915 = vpop.f32.mrf.mxu0
        %916 = vmatprep.mubr.bf16.mxu0 0
        %917 = vmatmul.mubr.bf16.gmra.mxu0 %v583
        %v918 = vpop.f32.mrf.mxu0
        %v919 = vadd.f32 0.0, %v918
        %v920 = vpop.f32.mrf.mxu0
        %v921 = vpop.f32.mrf.mxu0
        %v922 = vadd.f32 0.0, %v921
        %v923 = vpop.f32.mrf.mxu0
        %924 = vmatprep.mubr.bf16.mxu0 0
        %925 = vmatmul.mubr.bf16.gmra.mxu0 %v584
        %v926 = vpop.f32.mrf.mxu0
        %v927 = vadd.f32 0.0, %v926
        %v928 = vpop.f32.mrf.mxu0
        %v929 = vpop.f32.mrf.mxu0
        %v930 = vadd.f32 0.0, %v929
        %v931 = vpop.f32.mrf.mxu0
        %932 = vmatprep.mubr.bf16.mxu0 0
        %933 = vmatmul.mubr.bf16.gmra.mxu0 %v585
        %v934 = vpop.f32.mrf.mxu0
        %v935 = vadd.f32 0.0, %v934
        %v936 = vpop.f32.mrf.mxu0
        %v937 = vpop.f32.mrf.mxu0
        %v938 = vadd.f32 0.0, %v937
        %v939 = vpop.f32.mrf.mxu0
        %940 = vmatprep.mubr.bf16.mxu0 0
        %941 = vmatmul.mubr.bf16.gmra.mxu0 %v586
        %v942 = vpop.f32.mrf.mxu0
        %v943 = vadd.f32 0.0, %v942
        %v944 = vpop.f32.mrf.mxu0
        %v945 = vpop.f32.mrf.mxu0
        %v946 = vadd.f32 0.0, %v945
        %v947 = vpop.f32.mrf.mxu0
        %948 = vmatprep.mubr.bf16.mxu0 0
        %949 = vmatmul.mubr.bf16.gmra.mxu0 %v587
        %v950 = vpop.f32.mrf.mxu0
        %v951 = vadd.f32 0.0, %v950
        %v952 = vpop.f32.mrf.mxu0
        %v953 = vpop.f32.mrf.mxu0
        %v954 = vadd.f32 0.0, %v953
        %v955 = vpop.f32.mrf.mxu0
        %956 = vdwg.mxu0
        %v957 = vadd.f32 %v284, %v703
        %v958 = vadd.f32 %v285, %v706
        %v959 = vadd.f32 %v286, %v711
        %v960 = vadd.f32 %v287, %v714
        %v961 = vadd.f32 %v288, %v719
        %v962 = vadd.f32 %v289, %v722
        %v963 = vadd.f32 %v290, %v727
        %v964 = vadd.f32 %v291, %v730
        %v965 = vadd.f32 %v292, %v735
        %v966 = vadd.f32 %v293, %v738
        %v967 = vadd.f32 %v294, %v743
        %v968 = vadd.f32 %v295, %v746
        %v969 = vadd.f32 %v296, %v751
        %v970 = vadd.f32 %v297, %v754
        %v971 = vadd.f32 %v298, %v759
        %v972 = vadd.f32 %v299, %v762
        %v973 = vadd.f32 %v300, %v767
        %v974 = vadd.f32 %v301, %v770
        %v975 = vadd.f32 %v302, %v775
        %v976 = vadd.f32 %v303, %v778
        %v977 = vadd.f32 %v304, %v783
        %v978 = vadd.f32 %v305, %v786
        %v979 = vadd.f32 %v306, %v791
        %v980 = vadd.f32 %v307, %v794
        %v981 = vadd.f32 %v308, %v799
        %v982 = vadd.f32 %v309, %v802
        %v983 = vadd.f32 %v310, %v807
        %v984 = vadd.f32 %v311, %v810
        %v985 = vadd.f32 %v312, %v815
        %v986 = vadd.f32 %v313, %v818
        %v987 = vadd.f32 %v314, %v823
        %v988 = vadd.f32 %v315, %v826
        %v989 = vadd.f32 %v316, %v831
        %v990 = vadd.f32 %v317, %v834
        %v991 = vadd.f32 %v318, %v839
        %v992 = vadd.f32 %v319, %v842
        %v993 = vadd.f32 %v320, %v847
        %v994 = vadd.f32 %v321, %v850
        %v995 = vadd.f32 %v322, %v855
        %v996 = vadd.f32 %v323, %v858
        %v997 = vadd.f32 %v324, %v863
        %v998 = vadd.f32 %v325, %v866
        %v999 = vadd.f32 %v326, %v871
        %v1000 = vadd.f32 %v327, %v874
        %v1001 = vadd.f32 %v328, %v879
        %v1002 = vadd.f32 %v329, %v882
        %v1003 = vadd.f32 %v330, %v887
        %v1004 = vadd.f32 %v331, %v890
        %v1005 = vadd.f32 %v332, %v895
        %v1006 = vadd.f32 %v333, %v898
        %v1007 = vadd.f32 %v334, %v903
        %v1008 = vadd.f32 %v335, %v906
        %v1009 = vadd.f32 %v336, %v911
        %v1010 = vadd.f32 %v337, %v914
        %v1011 = vadd.f32 %v338, %v919
        %v1012 = vadd.f32 %v339, %v922
        %v1013 = vadd.f32 %v340, %v927
        %v1014 = vadd.f32 %v341, %v930
        %v1015 = vadd.f32 %v342, %v935
        %v1016 = vadd.f32 %v343, %v938
        %v1017 = vadd.f32 %v344, %v943
        %v1018 = vadd.f32 %v345, %v946
        %v1019 = vadd.f32 %v346, %v951
        %v1020 = vadd.f32 %v347, %v954
        %1021 = vst [vmem:[#allocation2] sm:$0xff] %v957
        %1022 = vst [vmem:[#allocation2 + $0x8] sm:$0xff] %v958
        %1023 = vst [vmem:[#allocation2 + $0x10] sm:$0xff] %v959
        %1024 = vst [vmem:[#allocation2 + $0x18] sm:$0xff] %v960
        %1025 = vst [vmem:[#allocation2 + $0x20] sm:$0xff] %v961
        %1026 = vst [vmem:[#allocation2 + $0x28] sm:$0xff] %v962
        %1027 = vst [vmem:[#allocation2 + $0x30] sm:$0xff] %v963
        %1028 = vst [vmem:[#allocation2 + $0x38] sm:$0xff] %v964
        %1029 = vst [vmem:[#allocation2 + $0x40] sm:$0xff] %v965
        %1030 = vst [vmem:[#allocation2 + $0x48] sm:$0xff] %v966
        %1031 = vst [vmem:[#allocation2 + $0x50] sm:$0xff] %v967
        %1032 = vst [vmem:[#allocation2 + $0x58] sm:$0xff] %v968
        %1033 = vst [vmem:[#allocation2 + $0x60] sm:$0xff] %v969
        %1034 = vst [vmem:[#allocation2 + $0x68] sm:$0xff] %v970
        %1035 = vst [vmem:[#allocation2 + $0x70] sm:$0xff] %v971
        %1036 = vst [vmem:[#allocation2 + $0x78] sm:$0xff] %v972
        %1037 = vst [vmem:[#allocation2 + $0x80] sm:$0xff] %v973
        %1038 = vst [vmem:[#allocation2 + $0x88] sm:$0xff] %v974
        %1039 = vst [vmem:[#allocation2 + $0x90] sm:$0xff] %v975
        %1040 = vst [vmem:[#allocation2 + $0x98] sm:$0xff] %v976
        %1041 = vst [vmem:[#allocation2 + $0xa0] sm:$0xff] %v977
        %1042 = vst [vmem:[#allocation2 + $0xa8] sm:$0xff] %v978
        %1043 = vst [vmem:[#allocation2 + $0xb0] sm:$0xff] %v979
        %1044 = vst [vmem:[#allocation2 + $0xb8] sm:$0xff] %v980
        %1045 = vst [vmem:[#allocation2 + $0xc0] sm:$0xff] %v981
        %1046 = vst [vmem:[#allocation2 + $0xc8] sm:$0xff] %v982
        %1047 = vst [vmem:[#allocation2 + $0xd0] sm:$0xff] %v983
        %1048 = vst [vmem:[#allocation2 + $0xd8] sm:$0xff] %v984
        %1049 = vst [vmem:[#allocation2 + $0xe0] sm:$0xff] %v985
        %1050 = vst [vmem:[#allocation2 + $0xe8] sm:$0xff] %v986
        %1051 = vst [vmem:[#allocation2 + $0xf0] sm:$0xff] %v987
        %1052 = vst [vmem:[#allocation2 + $0xf8] sm:$0xff] %v988
        %1053 = vst [vmem:[#allocation2 + $0x100] sm:$0xff] %v989
        %1054 = vst [vmem:[#allocation2 + $0x108] sm:$0xff] %v990
        %1055 = vst [vmem:[#allocation2 + $0x110] sm:$0xff] %v991
        %1056 = vst [vmem:[#allocation2 + $0x118] sm:$0xff] %v992
        %1057 = vst [vmem:[#allocation2 + $0x120] sm:$0xff] %v993
        %1058 = vst [vmem:[#allocation2 + $0x128] sm:$0xff] %v994
        %1059 = vst [vmem:[#allocation2 + $0x130] sm:$0xff] %v995
        %1060 = vst [vmem:[#allocation2 + $0x138] sm:$0xff] %v996
        %1061 = vst [vmem:[#allocation2 + $0x140] sm:$0xff] %v997
        %1062 = vst [vmem:[#allocation2 + $0x148] sm:$0xff] %v998
        %1063 = vst [vmem:[#allocation2 + $0x150] sm:$0xff] %v999
        %1064 = vst [vmem:[#allocation2 + $0x158] sm:$0xff] %v1000
        %1065 = vst [vmem:[#allocation2 + $0x160] sm:$0xff] %v1001
        %1066 = vst [vmem:[#allocation2 + $0x168] sm:$0xff] %v1002
        %1067 = vst [vmem:[#allocation2 + $0x170] sm:$0xff] %v1003
        %1068 = vst [vmem:[#allocation2 + $0x178] sm:$0xff] %v1004
        %1069 = vst [vmem:[#allocation2 + $0x180] sm:$0xff] %v1005
        %1070 = vst [vmem:[#allocation2 + $0x188] sm:$0xff] %v1006
        %1071 = vst [vmem:[#allocation2 + $0x190] sm:$0xff] %v1007
        %1072 = vst [vmem:[#allocation2 + $0x198] sm:$0xff] %v1008
        %1073 = vst [vmem:[#allocation2 + $0x1a0] sm:$0xff] %v1009
        %1074 = vst [vmem:[#allocation2 + $0x1a8] sm:$0xff] %v1010
        %1075 = vst [vmem:[#allocation2 + $0x1b0] sm:$0xff] %v1011
        %1076 = vst [vmem:[#allocation2 + $0x1b8] sm:$0xff] %v1012
        %1077 = vst [vmem:[#allocation2 + $0x1c0] sm:$0xff] %v1013
        %1078 = vst [vmem:[#allocation2 + $0x1c8] sm:$0xff] %v1014
        %1079 = vst [vmem:[#allocation2 + $0x1d0] sm:$0xff] %v1015
        %1080 = vst [vmem:[#allocation2 + $0x1d8] sm:$0xff] %v1016
        %1081 = vst [vmem:[#allocation2 + $0x1e0] sm:$0xff] %v1017
        %1082 = vst [vmem:[#allocation2 + $0x1e8] sm:$0xff] %v1018
        %1083 = vst [vmem:[#allocation2 + $0x1f0] sm:$0xff] %v1019
        %1084 = vst [vmem:[#allocation2 + $0x1f8] sm:$0xff] %v1020
        // Predicated region
        $region41: #{tpu_custom_call.1} parent=27 // pred_check
          %p1085 = pneg %p216
        $region42: #{tpu_custom_call.1} parent=27 // pred_check_branch
          %1087 = sbr.rel (%p1085) target = $region44
        $region43: #{tpu_custom_call.1} parent=27 // pred_region
          %v1088 = vld [vmem:[#allocation2] sm:$0xff]
          %v1089 = vld [vmem:[#allocation2 + $0x8] sm:$0xff]
          %v1090 = vld [vmem:[#allocation2 + $0x10] sm:$0xff]
          %v1091 = vld [vmem:[#allocation2 + $0x18] sm:$0xff]
          %v1092 = vld [vmem:[#allocation2 + $0x20] sm:$0xff]
          %v1093 = vld [vmem:[#allocation2 + $0x28] sm:$0xff]
          %v1094 = vld [vmem:[#allocation2 + $0x30] sm:$0xff]
          %v1095 = vld [vmem:[#allocation2 + $0x38] sm:$0xff]
          %v1096 = vld [vmem:[#allocation2 + $0x40] sm:$0xff]
          %v1097 = vld [vmem:[#allocation2 + $0x48] sm:$0xff]
          %v1098 = vld [vmem:[#allocation2 + $0x50] sm:$0xff]
          %v1099 = vld [vmem:[#allocation2 + $0x58] sm:$0xff]
          %v1100 = vld [vmem:[#allocation2 + $0x60] sm:$0xff]
          %v1101 = vld [vmem:[#allocation2 + $0x68] sm:$0xff]
          %v1102 = vld [vmem:[#allocation2 + $0x70] sm:$0xff]
          %v1103 = vld [vmem:[#allocation2 + $0x78] sm:$0xff]
          %v1104 = vld [vmem:[#allocation2 + $0x80] sm:$0xff]
          %v1105 = vld [vmem:[#allocation2 + $0x88] sm:$0xff]
          %v1106 = vld [vmem:[#allocation2 + $0x90] sm:$0xff]
          %v1107 = vld [vmem:[#allocation2 + $0x98] sm:$0xff]
          %v1108 = vld [vmem:[#allocation2 + $0xa0] sm:$0xff]
          %v1109 = vld [vmem:[#allocation2 + $0xa8] sm:$0xff]
          %v1110 = vld [vmem:[#allocation2 + $0xb0] sm:$0xff]
          %v1111 = vld [vmem:[#allocation2 + $0xb8] sm:$0xff]
          %v1112 = vld [vmem:[#allocation2 + $0xc0] sm:$0xff]
          %v1113 = vld [vmem:[#allocation2 + $0xc8] sm:$0xff]
          %v1114 = vld [vmem:[#allocation2 + $0xd0] sm:$0xff]
          %v1115 = vld [vmem:[#allocation2 + $0xd8] sm:$0xff]
          %v1116 = vld [vmem:[#allocation2 + $0xe0] sm:$0xff]
          %v1117 = vld [vmem:[#allocation2 + $0xe8] sm:$0xff]
          %v1118 = vld [vmem:[#allocation2 + $0xf0] sm:$0xff]
          %v1119 = vld [vmem:[#allocation2 + $0xf8] sm:$0xff]
          %v1120 = vld [vmem:[#allocation2 + $0x100] sm:$0xff]
          %v1121 = vld [vmem:[#allocation2 + $0x108] sm:$0xff]
          %v1122 = vld [vmem:[#allocation2 + $0x110] sm:$0xff]
          %v1123 = vld [vmem:[#allocation2 + $0x118] sm:$0xff]
          %v1124 = vld [vmem:[#allocation2 + $0x120] sm:$0xff]
          %v1125 = vld [vmem:[#allocation2 + $0x128] sm:$0xff]
          %v1126 = vld [vmem:[#allocation2 + $0x130] sm:$0xff]
          %v1127 = vld [vmem:[#allocation2 + $0x138] sm:$0xff]
          %v1128 = vld [vmem:[#allocation2 + $0x140] sm:$0xff]
          %v1129 = vld [vmem:[#allocation2 + $0x148] sm:$0xff]
          %v1130 = vld [vmem:[#allocation2 + $0x150] sm:$0xff]
          %v1131 = vld [vmem:[#allocation2 + $0x158] sm:$0xff]
          %v1132 = vld [vmem:[#allocation2 + $0x160] sm:$0xff]
          %v1133 = vld [vmem:[#allocation2 + $0x168] sm:$0xff]
          %v1134 = vld [vmem:[#allocation2 + $0x170] sm:$0xff]
          %v1135 = vld [vmem:[#allocation2 + $0x178] sm:$0xff]
          %v1136 = vld [vmem:[#allocation2 + $0x180] sm:$0xff]
          %v1137 = vld [vmem:[#allocation2 + $0x188] sm:$0xff]
          %v1138 = vld [vmem:[#allocation2 + $0x190] sm:$0xff]
          %v1139 = vld [vmem:[#allocation2 + $0x198] sm:$0xff]
          %v1140 = vld [vmem:[#allocation2 + $0x1a0] sm:$0xff]
          %v1141 = vld [vmem:[#allocation2 + $0x1a8] sm:$0xff]
          %v1142 = vld [vmem:[#allocation2 + $0x1b0] sm:$0xff]
          %v1143 = vld [vmem:[#allocation2 + $0x1b8] sm:$0xff]
          %v1144 = vld [vmem:[#allocation2 + $0x1c0] sm:$0xff]
          %v1145 = vld [vmem:[#allocation2 + $0x1c8] sm:$0xff]
          %v1146 = vld [vmem:[#allocation2 + $0x1d0] sm:$0xff]
          %v1147 = vld [vmem:[#allocation2 + $0x1d8] sm:$0xff]
          %v1148 = vld [vmem:[#allocation2 + $0x1e0] sm:$0xff]
          %v1149 = vld [vmem:[#allocation2 + $0x1e8] sm:$0xff]
          %v1150 = vld [vmem:[#allocation2 + $0x1f0] sm:$0xff]
          %v1151 = vld [vmem:[#allocation2 + $0x1f8] sm:$0xff]
          %vm1152 = vcmp.gt.f32.partialorder %v1088, 0.0
          %vm1153 = vcmp.gt.f32.partialorder %v1089, 0.0
          %vm1154 = vcmp.gt.f32.partialorder %v1090, 0.0
          %vm1155 = vcmp.gt.f32.partialorder %v1091, 0.0
          %vm1156 = vcmp.gt.f32.partialorder %v1092, 0.0
          %vm1157 = vcmp.gt.f32.partialorder %v1093, 0.0
          %vm1158 = vcmp.gt.f32.partialorder %v1094, 0.0
          %vm1159 = vcmp.gt.f32.partialorder %v1095, 0.0
          %vm1160 = vcmp.gt.f32.partialorder %v1096, 0.0
          %vm1161 = vcmp.gt.f32.partialorder %v1097, 0.0
          %vm1162 = vcmp.gt.f32.partialorder %v1098, 0.0
          %vm1163 = vcmp.gt.f32.partialorder %v1099, 0.0
          %vm1164 = vcmp.gt.f32.partialorder %v1100, 0.0
          %vm1165 = vcmp.gt.f32.partialorder %v1101, 0.0
          %vm1166 = vcmp.gt.f32.partialorder %v1102, 0.0
          %vm1167 = vcmp.gt.f32.partialorder %v1103, 0.0
          %vm1168 = vcmp.gt.f32.partialorder %v1104, 0.0
          %vm1169 = vcmp.gt.f32.partialorder %v1105, 0.0
          %vm1170 = vcmp.gt.f32.partialorder %v1106, 0.0
          %vm1171 = vcmp.gt.f32.partialorder %v1107, 0.0
          %vm1172 = vcmp.gt.f32.partialorder %v1108, 0.0
          %vm1173 = vcmp.gt.f32.partialorder %v1109, 0.0
          %vm1174 = vcmp.gt.f32.partialorder %v1110, 0.0
          %vm1175 = vcmp.gt.f32.partialorder %v1111, 0.0
          %vm1176 = vcmp.gt.f32.partialorder %v1112, 0.0
          %vm1177 = vcmp.gt.f32.partialorder %v1113, 0.0
          %vm1178 = vcmp.gt.f32.partialorder %v1114, 0.0
          %vm1179 = vcmp.gt.f32.partialorder %v1115, 0.0
          %vm1180 = vcmp.gt.f32.partialorder %v1116, 0.0
          %vm1181 = vcmp.gt.f32.partialorder %v1117, 0.0
          %vm1182 = vcmp.gt.f32.partialorder %v1118, 0.0
          %vm1183 = vcmp.gt.f32.partialorder %v1119, 0.0
          %vm1184 = vcmp.gt.f32.partialorder %v1120, 0.0
          %vm1185 = vcmp.gt.f32.partialorder %v1121, 0.0
          %vm1186 = vcmp.gt.f32.partialorder %v1122, 0.0
          %vm1187 = vcmp.gt.f32.partialorder %v1123, 0.0
          %vm1188 = vcmp.gt.f32.partialorder %v1124, 0.0
          %vm1189 = vcmp.gt.f32.partialorder %v1125, 0.0
          %vm1190 = vcmp.gt.f32.partialorder %v1126, 0.0
          %vm1191 = vcmp.gt.f32.partialorder %v1127, 0.0
          %vm1192 = vcmp.gt.f32.partialorder %v1128, 0.0
          %vm1193 = vcmp.gt.f32.partialorder %v1129, 0.0
          %vm1194 = vcmp.gt.f32.partialorder %v1130, 0.0
          %vm1195 = vcmp.gt.f32.partialorder %v1131, 0.0
          %vm1196 = vcmp.gt.f32.partialorder %v1132, 0.0
          %vm1197 = vcmp.gt.f32.partialorder %v1133, 0.0
          %vm1198 = vcmp.gt.f32.partialorder %v1134, 0.0
          %vm1199 = vcmp.gt.f32.partialorder %v1135, 0.0
          %vm1200 = vcmp.gt.f32.partialorder %v1136, 0.0
          %vm1201 = vcmp.gt.f32.partialorder %v1137, 0.0
          %vm1202 = vcmp.gt.f32.partialorder %v1138, 0.0
          %vm1203 = vcmp.gt.f32.partialorder %v1139, 0.0
          %vm1204 = vcmp.gt.f32.partialorder %v1140, 0.0
          %vm1205 = vcmp.gt.f32.partialorder %v1141, 0.0
          %vm1206 = vcmp.gt.f32.partialorder %v1142, 0.0
          %vm1207 = vcmp.gt.f32.partialorder %v1143, 0.0
          %vm1208 = vcmp.gt.f32.partialorder %v1144, 0.0
          %vm1209 = vcmp.gt.f32.partialorder %v1145, 0.0
          %vm1210 = vcmp.gt.f32.partialorder %v1146, 0.0
          %vm1211 = vcmp.gt.f32.partialorder %v1147, 0.0
          %vm1212 = vcmp.gt.f32.partialorder %v1148, 0.0
          %vm1213 = vcmp.gt.f32.partialorder %v1149, 0.0
          %vm1214 = vcmp.gt.f32.partialorder %v1150, 0.0
          %vm1215 = vcmp.gt.f32.partialorder %v1151, 0.0
          %v1216 = vmul.f32 %v1088, 0.2
          %v1217 = vmul.f32 %v1089, 0.2
          %v1218 = vmul.f32 %v1090, 0.2
          %v1219 = vmul.f32 %v1091, 0.2
          %v1220 = vmul.f32 %v1092, 0.2
          %v1221 = vmul.f32 %v1093, 0.2
          %v1222 = vmul.f32 %v1094, 0.2
          %v1223 = vmul.f32 %v1095, 0.2
          %v1224 = vmul.f32 %v1096, 0.2
          %v1225 = vmul.f32 %v1097, 0.2
          %v1226 = vmul.f32 %v1098, 0.2
          %v1227 = vmul.f32 %v1099, 0.2
          %v1228 = vmul.f32 %v1100, 0.2
          %v1229 = vmul.f32 %v1101, 0.2
          %v1230 = vmul.f32 %v1102, 0.2
          %v1231 = vmul.f32 %v1103, 0.2
          %v1232 = vmul.f32 %v1104, 0.2
          %v1233 = vmul.f32 %v1105, 0.2
          %v1234 = vmul.f32 %v1106, 0.2
          %v1235 = vmul.f32 %v1107, 0.2
          %v1236 = vmul.f32 %v1108, 0.2
          %v1237 = vmul.f32 %v1109, 0.2
          %v1238 = vmul.f32 %v1110, 0.2
          %v1239 = vmul.f32 %v1111, 0.2
          %v1240 = vmul.f32 %v1112, 0.2
          %v1241 = vmul.f32 %v1113, 0.2
          %v1242 = vmul.f32 %v1114, 0.2
          %v1243 = vmul.f32 %v1115, 0.2
          %v1244 = vmul.f32 %v1116, 0.2
          %v1245 = vmul.f32 %v1117, 0.2
          %v1246 = vmul.f32 %v1118, 0.2
          %v1247 = vmul.f32 %v1119, 0.2
          %v1248 = vmul.f32 %v1120, 0.2
          %v1249 = vmul.f32 %v1121, 0.2
          %v1250 = vmul.f32 %v1122, 0.2
          %v1251 = vmul.f32 %v1123, 0.2
          %v1252 = vmul.f32 %v1124, 0.2
          %v1253 = vmul.f32 %v1125, 0.2
          %v1254 = vmul.f32 %v1126, 0.2
          %v1255 = vmul.f32 %v1127, 0.2
          %v1256 = vmul.f32 %v1128, 0.2
          %v1257 = vmul.f32 %v1129, 0.2
          %v1258 = vmul.f32 %v1130, 0.2
          %v1259 = vmul.f32 %v1131, 0.2
          %v1260 = vmul.f32 %v1132, 0.2
          %v1261 = vmul.f32 %v1133, 0.2
          %v1262 = vmul.f32 %v1134, 0.2
          %v1263 = vmul.f32 %v1135, 0.2
          %v1264 = vmul.f32 %v1136, 0.2
          %v1265 = vmul.f32 %v1137, 0.2
          %v1266 = vmul.f32 %v1138, 0.2
          %v1267 = vmul.f32 %v1139, 0.2
          %v1268 = vmul.f32 %v1140, 0.2
          %v1269 = vmul.f32 %v1141, 0.2
          %v1270 = vmul.f32 %v1142, 0.2
          %v1271 = vmul.f32 %v1143, 0.2
          %v1272 = vmul.f32 %v1144, 0.2
          %v1273 = vmul.f32 %v1145, 0.2
          %v1274 = vmul.f32 %v1146, 0.2
          %v1275 = vmul.f32 %v1147, 0.2
          %v1276 = vmul.f32 %v1148, 0.2
          %v1277 = vmul.f32 %v1149, 0.2
          %v1278 = vmul.f32 %v1150, 0.2
          %v1279 = vmul.f32 %v1151, 0.2
          %v1280 = vsel %vm1152, %v1088, %v1216
          %v1281 = vsel %vm1153, %v1089, %v1217
          %v1282 = vsel %vm1154, %v1090, %v1218
          %v1283 = vsel %vm1155, %v1091, %v1219
          %v1284 = vsel %vm1156, %v1092, %v1220
          %v1285 = vsel %vm1157, %v1093, %v1221
          %v1286 = vsel %vm1158, %v1094, %v1222
          %v1287 = vsel %vm1159, %v1095, %v1223
          %v1288 = vsel %vm1160, %v1096, %v1224
          %v1289 = vsel %vm1161, %v1097, %v1225
          %v1290 = vsel %vm1162, %v1098, %v1226
          %v1291 = vsel %vm1163, %v1099, %v1227
          %v1292 = vsel %vm1164, %v1100, %v1228
          %v1293 = vsel %vm1165, %v1101, %v1229
          %v1294 = vsel %vm1166, %v1102, %v1230
          %v1295 = vsel %vm1167, %v1103, %v1231
          %v1296 = vsel %vm1168, %v1104, %v1232
          %v1297 = vsel %vm1169, %v1105, %v1233
          %v1298 = vsel %vm1170, %v1106, %v1234
          %v1299 = vsel %vm1171, %v1107, %v1235
          %v1300 = vsel %vm1172, %v1108, %v1236
          %v1301 = vsel %vm1173, %v1109, %v1237
          %v1302 = vsel %vm1174, %v1110, %v1238
          %v1303 = vsel %vm1175, %v1111, %v1239
          %v1304 = vsel %vm1176, %v1112, %v1240
          %v1305 = vsel %vm1177, %v1113, %v1241
          %v1306 = vsel %vm1178, %v1114, %v1242
          %v1307 = vsel %vm1179, %v1115, %v1243
          %v1308 = vsel %vm1180, %v1116, %v1244
          %v1309 = vsel %vm1181, %v1117, %v1245
          %v1310 = vsel %vm1182, %v1118, %v1246
          %v1311 = vsel %vm1183, %v1119, %v1247
          %v1312 = vsel %vm1184, %v1120, %v1248
          %v1313 = vsel %vm1185, %v1121, %v1249
          %v1314 = vsel %vm1186, %v1122, %v1250
          %v1315 = vsel %vm1187, %v1123, %v1251
          %v1316 = vsel %vm1188, %v1124, %v1252
          %v1317 = vsel %vm1189, %v1125, %v1253
          %v1318 = vsel %vm1190, %v1126, %v1254
          %v1319 = vsel %vm1191, %v1127, %v1255
          %v1320 = vsel %vm1192, %v1128, %v1256
          %v1321 = vsel %vm1193, %v1129, %v1257
          %v1322 = vsel %vm1194, %v1130, %v1258
          %v1323 = vsel %vm1195, %v1131, %v1259
          %v1324 = vsel %vm1196, %v1132, %v1260
          %v1325 = vsel %vm1197, %v1133, %v1261
          %v1326 = vsel %vm1198, %v1134, %v1262
          %v1327 = vsel %vm1199, %v1135, %v1263
          %v1328 = vsel %vm1200, %v1136, %v1264
          %v1329 = vsel %vm1201, %v1137, %v1265
          %v1330 = vsel %vm1202, %v1138, %v1266
          %v1331 = vsel %vm1203, %v1139, %v1267
          %v1332 = vsel %vm1204, %v1140, %v1268
          %v1333 = vsel %vm1205, %v1141, %v1269
          %v1334 = vsel %vm1206, %v1142, %v1270
          %v1335 = vsel %vm1207, %v1143, %v1271
          %v1336 = vsel %vm1208, %v1144, %v1272
          %v1337 = vsel %vm1209, %v1145, %v1273
          %v1338 = vsel %vm1210, %v1146, %v1274
          %v1339 = vsel %vm1211, %v1147, %v1275
          %v1340 = vsel %vm1212, %v1148, %v1276
          %v1341 = vsel %vm1213, %v1149, %v1277
          %v1342 = vsel %vm1214, %v1150, %v1278
          %v1343 = vsel %vm1215, %v1151, %v1279
          %v1344 = vpack.c.bf16 %v1281, %v1280
          %v1345 = vpack.c.bf16 %v1283, %v1282
          %v1346 = vpack.c.bf16 %v1285, %v1284
          %v1347 = vpack.c.bf16 %v1287, %v1286
          %v1348 = vpack.c.bf16 %v1289, %v1288
          %v1349 = vpack.c.bf16 %v1291, %v1290
          %v1350 = vpack.c.bf16 %v1293, %v1292
          %v1351 = vpack.c.bf16 %v1295, %v1294
          %v1352 = vpack.c.bf16 %v1297, %v1296
          %v1353 = vpack.c.bf16 %v1299, %v1298
          %v1354 = vpack.c.bf16 %v1301, %v1300
          %v1355 = vpack.c.bf16 %v1303, %v1302
          %v1356 = vpack.c.bf16 %v1305, %v1304
          %v1357 = vpack.c.bf16 %v1307, %v1306
          %v1358 = vpack.c.bf16 %v1309, %v1308
          %v1359 = vpack.c.bf16 %v1311, %v1310
          %v1360 = vpack.c.bf16 %v1313, %v1312
          %v1361 = vpack.c.bf16 %v1315, %v1314
          %v1362 = vpack.c.bf16 %v1317, %v1316
          %v1363 = vpack.c.bf16 %v1319, %v1318
          %v1364 = vpack.c.bf16 %v1321, %v1320
          %v1365 = vpack.c.bf16 %v1323, %v1322
          %v1366 = vpack.c.bf16 %v1325, %v1324
          %v1367 = vpack.c.bf16 %v1327, %v1326
          %v1368 = vpack.c.bf16 %v1329, %v1328
          %v1369 = vpack.c.bf16 %v1331, %v1330
          %v1370 = vpack.c.bf16 %v1333, %v1332
          %v1371 = vpack.c.bf16 %v1335, %v1334
          %v1372 = vpack.c.bf16 %v1337, %v1336
          %v1373 = vpack.c.bf16 %v1339, %v1338
          %v1374 = vpack.c.bf16 %v1341, %v1340
          %v1375 = vpack.c.bf16 %v1343, %v1342
          %v1408 = vunpack.c.l.b16 %v1344
          %v1409 = vunpack.c.h.b16 %v1344
          %v1410 = vunpack.c.l.b16 %v1345
          %v1411 = vunpack.c.h.b16 %v1345
          %v1412 = vunpack.c.l.b16 %v1346
          %v1413 = vunpack.c.h.b16 %v1346
          %v1414 = vunpack.c.l.b16 %v1347
          %v1415 = vunpack.c.h.b16 %v1347
          %v1416 = vunpack.c.l.b16 %v1348
          %v1417 = vunpack.c.h.b16 %v1348
          %v1418 = vunpack.c.l.b16 %v1349
          %v1419 = vunpack.c.h.b16 %v1349
          %v1420 = vunpack.c.l.b16 %v1350
          %v1421 = vunpack.c.h.b16 %v1350
          %v1422 = vunpack.c.l.b16 %v1351
          %v1423 = vunpack.c.h.b16 %v1351
          %v1424 = vunpack.c.l.b16 %v1352
          %v1425 = vunpack.c.h.b16 %v1352
          %v1426 = vunpack.c.l.b16 %v1353
          %v1427 = vunpack.c.h.b16 %v1353
          %v1428 = vunpack.c.l.b16 %v1354
          %v1429 = vunpack.c.h.b16 %v1354
          %v1430 = vunpack.c.l.b16 %v1355
          %v1431 = vunpack.c.h.b16 %v1355
          %v1432 = vunpack.c.l.b16 %v1356
          %v1433 = vunpack.c.h.b16 %v1356
          %v1434 = vunpack.c.l.b16 %v1357
          %v1435 = vunpack.c.h.b16 %v1357
          %v1436 = vunpack.c.l.b16 %v1358
          %v1437 = vunpack.c.h.b16 %v1358
          %v1438 = vunpack.c.l.b16 %v1359
          %v1439 = vunpack.c.h.b16 %v1359
          %v1440 = vunpack.c.l.b16 %v1360
          %v1441 = vunpack.c.h.b16 %v1360
          %v1442 = vunpack.c.l.b16 %v1361
          %v1443 = vunpack.c.h.b16 %v1361
          %v1444 = vunpack.c.l.b16 %v1362
          %v1445 = vunpack.c.h.b16 %v1362
          %v1446 = vunpack.c.l.b16 %v1363
          %v1447 = vunpack.c.h.b16 %v1363
          %v1448 = vunpack.c.l.b16 %v1364
          %v1449 = vunpack.c.h.b16 %v1364
          %v1450 = vunpack.c.l.b16 %v1365
          %v1451 = vunpack.c.h.b16 %v1365
          %v1452 = vunpack.c.l.b16 %v1366
          %v1453 = vunpack.c.h.b16 %v1366
          %v1454 = vunpack.c.l.b16 %v1367
          %v1455 = vunpack.c.h.b16 %v1367
          %v1456 = vunpack.c.l.b16 %v1368
          %v1457 = vunpack.c.h.b16 %v1368
          %v1458 = vunpack.c.l.b16 %v1369
          %v1459 = vunpack.c.h.b16 %v1369
          %v1460 = vunpack.c.l.b16 %v1370
          %v1461 = vunpack.c.h.b16 %v1370
          %v1462 = vunpack.c.l.b16 %v1371
          %v1463 = vunpack.c.h.b16 %v1371
          %v1464 = vunpack.c.l.b16 %v1372
          %v1465 = vunpack.c.h.b16 %v1372
          %v1466 = vunpack.c.l.b16 %v1373
          %v1467 = vunpack.c.h.b16 %v1373
          %v1468 = vunpack.c.l.b16 %v1374
          %v1469 = vunpack.c.h.b16 %v1374
          %v1470 = vunpack.c.l.b16 %v1375
          %v1471 = vunpack.c.h.b16 %v1375
          %v1472 = vpack.c.b16 %v1408, %v1408
          %v1473 = vpack.c.b16 %v1409, %v1409
          %v1474 = vpack.c.b16 %v1410, %v1410
          %v1475 = vpack.c.b16 %v1411, %v1411
          %v1476 = vpack.c.b16 %v1412, %v1412
          %v1477 = vpack.c.b16 %v1413, %v1413
          %v1478 = vpack.c.b16 %v1414, %v1414
          %v1479 = vpack.c.b16 %v1415, %v1415
          %v1480 = vpack.c.b16 %v1416, %v1416
          %v1481 = vpack.c.b16 %v1417, %v1417
          %v1482 = vpack.c.b16 %v1418, %v1418
          %v1483 = vpack.c.b16 %v1419, %v1419
          %v1484 = vpack.c.b16 %v1420, %v1420
          %v1485 = vpack.c.b16 %v1421, %v1421
          %v1486 = vpack.c.b16 %v1422, %v1422
          %v1487 = vpack.c.b16 %v1423, %v1423
          %v1488 = vpack.c.b16 %v1424, %v1424
          %v1489 = vpack.c.b16 %v1425, %v1425
          %v1490 = vpack.c.b16 %v1426, %v1426
          %v1491 = vpack.c.b16 %v1427, %v1427
          %v1492 = vpack.c.b16 %v1428, %v1428
          %v1493 = vpack.c.b16 %v1429, %v1429
          %v1494 = vpack.c.b16 %v1430, %v1430
          %v1495 = vpack.c.b16 %v1431, %v1431
          %v1496 = vpack.c.b16 %v1432, %v1432
          %v1497 = vpack.c.b16 %v1433, %v1433
          %v1498 = vpack.c.b16 %v1434, %v1434
          %v1499 = vpack.c.b16 %v1435, %v1435
          %v1500 = vpack.c.b16 %v1436, %v1436
          %v1501 = vpack.c.b16 %v1437, %v1437
          %v1502 = vpack.c.b16 %v1438, %v1438
          %v1503 = vpack.c.b16 %v1439, %v1439
          %v1504 = vpack.c.b16 %v1440, %v1440
          %v1505 = vpack.c.b16 %v1441, %v1441
          %v1506 = vpack.c.b16 %v1442, %v1442
          %v1507 = vpack.c.b16 %v1443, %v1443
          %v1508 = vpack.c.b16 %v1444, %v1444
          %v1509 = vpack.c.b16 %v1445, %v1445
          %v1510 = vpack.c.b16 %v1446, %v1446
          %v1511 = vpack.c.b16 %v1447, %v1447
          %v1512 = vpack.c.b16 %v1448, %v1448
          %v1513 = vpack.c.b16 %v1449, %v1449
          %v1514 = vpack.c.b16 %v1450, %v1450
          %v1515 = vpack.c.b16 %v1451, %v1451
          %v1516 = vpack.c.b16 %v1452, %v1452
          %v1517 = vpack.c.b16 %v1453, %v1453
          %v1518 = vpack.c.b16 %v1454, %v1454
          %v1519 = vpack.c.b16 %v1455, %v1455
          %v1520 = vpack.c.b16 %v1456, %v1456
          %v1521 = vpack.c.b16 %v1457, %v1457
          %v1522 = vpack.c.b16 %v1458, %v1458
          %v1523 = vpack.c.b16 %v1459, %v1459
          %v1524 = vpack.c.b16 %v1460, %v1460
          %v1525 = vpack.c.b16 %v1461, %v1461
          %v1526 = vpack.c.b16 %v1462, %v1462
          %v1527 = vpack.c.b16 %v1463, %v1463
          %v1528 = vpack.c.b16 %v1464, %v1464
          %v1529 = vpack.c.b16 %v1465, %v1465
          %v1530 = vpack.c.b16 %v1466, %v1466
          %v1531 = vpack.c.b16 %v1467, %v1467
          %v1532 = vpack.c.b16 %v1468, %v1468
          %v1533 = vpack.c.b16 %v1469, %v1469
          %v1534 = vpack.c.b16 %v1470, %v1470
          %v1535 = vpack.c.b16 %v1471, %v1471
          %1600 = vst [vmem:[%s211] sm:$0xf] %v1472
          %1601 = vst [vmem:[%s211 + $0x4] sm:$0xf] %v1473
          %1602 = vst [vmem:[%s211 + $0x8] sm:$0xf] %v1474
          %1603 = vst [vmem:[%s211 + $0xc] sm:$0xf] %v1475
          %1604 = vst [vmem:[%s211 + $0x10] sm:$0xf] %v1476
          %1605 = vst [vmem:[%s211 + $0x14] sm:$0xf] %v1477
          %1606 = vst [vmem:[%s211 + $0x18] sm:$0xf] %v1478
          %1607 = vst [vmem:[%s211 + $0x1c] sm:$0xf] %v1479
          %1608 = vst [vmem:[%s211 + $0x20] sm:$0xf] %v1480
          %1609 = vst [vmem:[%s211 + $0x24] sm:$0xf] %v1481
          %1610 = vst [vmem:[%s211 + $0x28] sm:$0xf] %v1482
          %1611 = vst [vmem:[%s211 + $0x2c] sm:$0xf] %v1483
          %1612 = vst [vmem:[%s211 + $0x30] sm:$0xf] %v1484
          %1613 = vst [vmem:[%s211 + $0x34] sm:$0xf] %v1485
          %1614 = vst [vmem:[%s211 + $0x38] sm:$0xf] %v1486
          %1615 = vst [vmem:[%s211 + $0x3c] sm:$0xf] %v1487
          %1616 = vst [vmem:[%s211 + $0x40] sm:$0xf] %v1488
          %1617 = vst [vmem:[%s211 + $0x44] sm:$0xf] %v1489
          %1618 = vst [vmem:[%s211 + $0x48] sm:$0xf] %v1490
          %1619 = vst [vmem:[%s211 + $0x4c] sm:$0xf] %v1491
          %1620 = vst [vmem:[%s211 + $0x50] sm:$0xf] %v1492
          %1621 = vst [vmem:[%s211 + $0x54] sm:$0xf] %v1493
          %1622 = vst [vmem:[%s211 + $0x58] sm:$0xf] %v1494
          %1623 = vst [vmem:[%s211 + $0x5c] sm:$0xf] %v1495
          %1624 = vst [vmem:[%s211 + $0x60] sm:$0xf] %v1496
          %1625 = vst [vmem:[%s211 + $0x64] sm:$0xf] %v1497
          %1626 = vst [vmem:[%s211 + $0x68] sm:$0xf] %v1498
          %1627 = vst [vmem:[%s211 + $0x6c] sm:$0xf] %v1499
          %1628 = vst [vmem:[%s211 + $0x70] sm:$0xf] %v1500
          %1629 = vst [vmem:[%s211 + $0x74] sm:$0xf] %v1501
          %1630 = vst [vmem:[%s211 + $0x78] sm:$0xf] %v1502
          %1631 = vst [vmem:[%s211 + $0x7c] sm:$0xf] %v1503
          %1632 = vst [vmem:[%s211 + $0x80] sm:$0xf] %v1504
          %1633 = vst [vmem:[%s211 + $0x84] sm:$0xf] %v1505
          %1634 = vst [vmem:[%s211 + $0x88] sm:$0xf] %v1506
          %1635 = vst [vmem:[%s211 + $0x8c] sm:$0xf] %v1507
          %1636 = vst [vmem:[%s211 + $0x90] sm:$0xf] %v1508
          %1637 = vst [vmem:[%s211 + $0x94] sm:$0xf] %v1509
          %1638 = vst [vmem:[%s211 + $0x98] sm:$0xf] %v1510
          %1639 = vst [vmem:[%s211 + $0x9c] sm:$0xf] %v1511
          %1640 = vst [vmem:[%s211 + $0xa0] sm:$0xf] %v1512
          %1641 = vst [vmem:[%s211 + $0xa4] sm:$0xf] %v1513
          %1642 = vst [vmem:[%s211 + $0xa8] sm:$0xf] %v1514
          %1643 = vst [vmem:[%s211 + $0xac] sm:$0xf] %v1515
          %1644 = vst [vmem:[%s211 + $0xb0] sm:$0xf] %v1516
          %1645 = vst [vmem:[%s211 + $0xb4] sm:$0xf] %v1517
          %1646 = vst [vmem:[%s211 + $0xb8] sm:$0xf] %v1518
          %1647 = vst [vmem:[%s211 + $0xbc] sm:$0xf] %v1519
          %1648 = vst [vmem:[%s211 + $0xc0] sm:$0xf] %v1520
          %1649 = vst [vmem:[%s211 + $0xc4] sm:$0xf] %v1521
          %1650 = vst [vmem:[%s211 + $0xc8] sm:$0xf] %v1522
          %1651 = vst [vmem:[%s211 + $0xcc] sm:$0xf] %v1523
          %1652 = vst [vmem:[%s211 + $0xd0] sm:$0xf] %v1524
          %1653 = vst [vmem:[%s211 + $0xd4] sm:$0xf] %v1525
          %1654 = vst [vmem:[%s211 + $0xd8] sm:$0xf] %v1526
          %1655 = vst [vmem:[%s211 + $0xdc] sm:$0xf] %v1527
          %1656 = vst [vmem:[%s211 + $0xe0] sm:$0xf] %v1528
          %1657 = vst [vmem:[%s211 + $0xe4] sm:$0xf] %v1529
          %1658 = vst [vmem:[%s211 + $0xe8] sm:$0xf] %v1530
          %1659 = vst [vmem:[%s211 + $0xec] sm:$0xf] %v1531
          %1660 = vst [vmem:[%s211 + $0xf0] sm:$0xf] %v1532
          %1661 = vst [vmem:[%s211 + $0xf4] sm:$0xf] %v1533
          %1662 = vst [vmem:[%s211 + $0xf8] sm:$0xf] %v1534
          %1663 = vst [vmem:[%s211 + $0xfc] sm:$0xf] %v1535
        $region44: #{tpu_custom_call.1} parent=27 // pred_fallthru
          _
        %s1664 = sand.u32 %s105, 1
        %s1665 = scalar_lea.sflag [#allocation5], %s1664
        %s1666 = sand.u32 %s105, 1
        %s1667 = smul.addr %s1666, 256
        %s1668 = scalar_lea.vmem [#allocation8], %s1667
        // Predicated region
        $region45: #{tpu_custom_call.1} parent=27 // pred_check
          %p1669 = pneg %p115
        $region46: #{tpu_custom_call.1} parent=27 // pred_check_branch
          %1671 = sbr.rel (%p1669) target = $region48
        $region47: #{tpu_custom_call.1} parent=27 // pred_region
          %s1672 = smul.u32 64, %s25
          %s1674 = ssub.s32 4096, 4096
          %1675 = vsyncadd %s1665, %s1674
          %s1676 = sadd.s32 %s26, %s1672
          %s1677 = smul.addr %s1676, 64
          %s1678 = scalar_lea.hbm %s2, %s1677
          %s1679 = sshll.u32 %s1668, 4
          %s1680 = int_to_ptr.vmem [resolvable:$true] %s1679
          %1685 = dma.vmem_to_hbm [thread:$0]  %s1680, 4096, %s1678, %s1665, 64, 64, 4
        $region48: #{tpu_custom_call.1} parent=27 // pred_fallthru
          _
      $region28: #{tpu_custom_call.1} parent=5 // pred_fallthru
        _
      %p1686 = scmp.le.s32.totalorder 2, %s15
      // Predicated region
      $region49: #{tpu_custom_call.1} parent=5 // pred_check
        %p1687 = pneg %p1686
      $region50: #{tpu_custom_call.1} parent=5 // pred_check_branch
        %1689 = sbr.rel (%p1687) target = $region52
      $region51: #{tpu_custom_call.1} parent=5 // pred_region
        %s1690 = ssub.s32 %s15, 2
        // Predicated region
        $region53: #{tpu_custom_call.1} parent=51 // pred_check
          %p1691 = pneg %p121
        $region54: #{tpu_custom_call.1} parent=51 // pred_check_branch
          %1693 = sbr.rel (%p1691) target = $region56
        $region55: #{tpu_custom_call.1} parent=51 // pred_region
          %s1694 = sand.u32 %s106, 1
          %s1695 = scalar_lea.sflag [#allocation5], %s1694
          %s1696 = sand.u32 %s106, 1
          %s1697 = smul.addr %s1696, 256
          %s1698 = scalar_lea.vmem [#allocation8], %s1697
          %1699 = dma.done %s1695, 4096
        $region56: #{tpu_custom_call.1} parent=51 // pred_fallthru
          _
      $region52: #{tpu_custom_call.1} parent=5 // pred_fallthru
        _
    $region6: #{tpu_custom_call.1} parent=1 // loop_footer
      %s19 = sadd.s32 1, %s15
    $region7: #{tpu_custom_call.1} parent=1 // loop_footer_branch
      %14 = sbr.rel target = $region3
    $region8: #{tpu_custom_call.1} parent=1 // loop_exit
      _
    %1700 = vsyncpa [#allocation4], 1
    %s1701 = scalar_lea.sflag [#allocation4], 1
    %1702 = vsyncpa %s1701, 1
    %1703 = vsyncpa [#allocation7], 1
    %1704 = vsyncpa [#allocation5], 1
    %s1705 = scalar_lea.sflag [#allocation5], 1
    %1706 = vsyncpa %s1705, 1

</llo_original>
